<compile_context>
chip_gen: v6e
topology: v6e:2x2x1
jax: 0.10.0
libtpu: 0.0.40
codegen_flags: <defaults>
</compile_context>

<pallas_src>
import numpy as np
import jax
import jax.numpy as jnp
from jax import lax
from jax.experimental import pallas as pl
from jax.experimental.pallas import tpu as pltpu

NEG_SLOPE = 0.2
BN_EPS = 1e-5
LANE = 128
SUBLANE = 8


def _round_up(x, m):
    return (x + m - 1) // m * m


def _leaky(x, slope=NEG_SLOPE):
    return jnp.where(x >= 0, x, slope * x)


def _hyper_conv(h, inc_bf, inc_f, neg_bias, wl_t, ax_blk, ae_blk, bias, heads, d_inv, b_inv):
    """Dense HypergraphConv(use_attention=True, concat=False), eval mode.

    h        : (N, D)  f32 node features (D = padded d_model)
    inc_bf   : (N, E)  bf16 0/1 incidence
    inc_f    : (N, E)  f32  0/1 incidence (hoisted, shared across heads / both conv layers)
    neg_bias : (N, E)  f32  0 where incident, -1e30 elsewhere (hoisted)
    wl_t     : (D, heads*F) bf16, per-head column blocks (F = padded out_channels)
    ax_blk   : (8, heads*F) f32 block-diag att (node part), rows >= heads are zero
    ae_blk   : (8, heads*F) f32 block-diag att (edge part)
    bias     : (1, F)  f32
    d_inv    : (N, 1)  f32  1/node-degree (0 where degree==0)
    b_inv    : (E, 1)  f32  1/edge-degree (0 where degree==0)
    """
    N = h.shape[0]
    HF = wl_t.shape[1]
    F = HF // heads

    x_lin = jnp.dot(h.astype(jnp.bfloat16), wl_t,
                    preferred_element_type=jnp.float32)                      # (N, heads*F)
    x_lin_bf = x_lin.astype(jnp.bfloat16)                                    # cast once, sliced per head

    # per-head attention logits via MXU (no cross-lane reductions, no transposes, no e_lin):
    #   sx_all[n, hd] = sum_f x_lin[n, hd*F+f] * att[hd, f]
    #   se_all[hd, e] = sum_f (H^T x_lin)[e, hd*F+f] * att[hd, F+f]
    #                 = sum_n inc[n, e] * (sum_f x_lin[n, hd*F+f] * att[hd, F+f])
    sx_all = lax.dot_general(x_lin, ax_blk, (((1,), (1,)), ((), ())),
                             preferred_element_type=jnp.float32)             # (N, 8)
    se_small = lax.dot_general(ae_blk, x_lin, (((1,), (1,)), ((), ())),
                               preferred_element_type=jnp.float32)           # (8, N)
    se_all = jnp.dot(se_small.astype(jnp.bfloat16), inc_bf,
                     preferred_element_type=jnp.float32)                     # (8, E)

    scale = d_inv * (1.0 / heads)                                            # hoisted out of loop
    acc = jnp.zeros((N, F), jnp.float32)
    for hd in range(heads):                                                  # heads static (4 or 1)
        xh = x_lin_bf[:, hd * F:(hd + 1) * F]                                # (N, F) bf16
        # masked per-node softmax over hyperedges (arithmetic masking, no VPU selects)
        score = _leaky(sx_all[:, hd:hd + 1] + se_all[hd:hd + 1, :]) + neg_bias   # (N, E)
        m = jnp.max(score, axis=1, keepdims=True)
        # keep the inc_f multiply BEFORE the denom clamp: fully-masked (isolated/padded) rows
        # end with denom==0 -> alpha==0 (no NaN). Do not reorder.
        ex = jnp.exp(score - m) * inc_f
        denom = jnp.sum(ex, axis=1, keepdims=True)
        alpha = ex * pl.reciprocal(jnp.maximum(denom, 1e-30), approx=True)
        # H is clamped to 0/1 on host and ex is already masked, so alpha == alpha * H.
        w = alpha.astype(jnp.bfloat16)                                       # (N, E)
        # node -> hyperedge: edge_out[e, f] = sum_n w[n, e] * xh[n, f]   (lhs-transposed dot)
        edge_out = lax.dot_general(w, xh, (((0,), (0,)), ((), ())),
                                   preferred_element_type=jnp.float32)       # (E, F)
        edge_out = edge_out * b_inv
        # hyperedge -> node
        node_out = jnp.dot(w, edge_out.astype(jnp.bfloat16),
                           preferred_element_type=jnp.float32)               # (N, F)
        acc = acc + node_out
    # D^-1 normalization and mean over heads hoisted out of the loop; concat=False -> mean.
    return acc * scale + bias


def hgat_kernel(x_ref, inc_ref, dinv_ref, binv_ref,
                w1_ref, wl1_ref, wl2_ref, w2_ref,
                ax1_ref, ae1_ref, ax2_ref, ae2_ref,
                vdm_ref, vdin_ref, o_ref):
    xf = x_ref[...]                      # (Np, DIp) f32 -- also the residual `src`
    inc_bf = inc_ref[...]                # (Np, Ep) bf16 0/1 incidence
    # hoisted mask arithmetic (shared by both hyperconv layers and all heads)
    inc_f = inc_bf.astype(jnp.float32)
    neg_bias = (inc_f - 1.0) * 1e30      # 0 where incident, -1e30 elsewhere
    d_inv = dinv_ref[...]                # (Np, 1)
    b_inv = binv_ref[...]                # (Ep, 1)

    # packed per-feature vectors (folded eval BatchNorm + biases)
    b1, bn1s, bn1b = vdm_ref[0:1, :], vdm_ref[1:2, :], vdm_ref[2:3, :]
    hb1, bn2s, bn2b = vdm_ref[3:4, :], vdm_ref[4:5, :], vdm_ref[5:6, :]
    hb2, bn3s, bn3b = vdm_ref[6:7, :], vdm_ref[7:8, :], vdm_ref[8:9, :]
    b2, bn4s, bn4b = vdin_ref[0:1, :], vdin_ref[1:2, :], vdin_ref[2:3, :]

    # linear1 + leaky_relu + (dropout1 = id) + bn1
    h = _leaky(jnp.dot(xf.astype(jnp.bfloat16), w1_ref[...],
                       preferred_element_type=jnp.float32) + b1)
    h = h * bn1s + bn1b

    # hatt1 (heads=4) + residual + bn2
    h = h + _hyper_conv(h, inc_bf, inc_f, neg_bias, wl1_ref[...],
                        ax1_ref[...], ae1_ref[...], hb1, 4, d_inv, b_inv)
    h = h * bn2s + bn2b

    # hatt2 (heads=1) + residual + bn3
    h = h + _hyper_conv(h, inc_bf, inc_f, neg_bias, wl2_ref[...],
                        ax2_ref[...], ae2_ref[...], hb2, 1, d_inv, b_inv)
    h = h * bn3s + bn3b

    # linear2 + leaky_relu + residual(src) + bn4 (per-d_model channel, tiled to d_in on host)
    y = _leaky(jnp.dot(h.astype(jnp.bfloat16), w2_ref[...],
                       preferred_element_type=jnp.float32) + b2)
    y = xf + y
    o_ref[...] = y * bn4s + bn4b


def make_params(key, d_in, d_model):
    """Parameters in PyTorch layout (weights pre-transposed to (in, out)), f32, unpadded."""
    ks = jax.random.split(key, 10)

    def n(k, shape, scale=0.05):
        return (scale * jax.random.normal(k, shape)).astype(jnp.float32)

    p = {
        "w1_t":  n(ks[0], (d_in, d_model)),         # linear1.weight.T
        "b1":    n(ks[1], (1, d_model)),
        "wl1_t": n(ks[2], (d_model, 4 * d_model)),  # hatt1.lin.weight.T (heads=4)
        "att1":  n(ks[3], (4, 2 * d_model)),        # hatt1.att
        "hb1":   n(ks[4], (1, d_model)),            # hatt1.bias
        "wl2_t": n(ks[5], (d_model, d_model)),      # hatt2.lin.weight.T (heads=1)
        "att2":  n(ks[6], (1, 2 * d_model)),        # hatt2.att
        "hb2":   n(ks[7], (1, d_model)),            # hatt2.bias
        "w2_t":  n(ks[8], (d_model, d_in)),         # linear2.weight.T
        "b2":    n(ks[9], (1, d_in)),
    }
    # BatchNorm1d eval fold: scale = gamma/sqrt(var+eps) = 1/sqrt(1+eps), shift = 0 (fresh module)
    bn_scale = float(1.0 / np.sqrt(1.0 + BN_EPS))
    for name in ("bn1", "bn2", "bn3"):
        p[name + "s"] = jnp.full((1, d_model), bn_scale, jnp.float32)
        p[name + "b"] = jnp.zeros((1, d_model), jnp.float32)
    # bn4 acts on the d_model channel of (N, P, d_model); reshape(N, P*d_model) keeps d_model
    # fastest-varying (column j = p*d_model + c), so tiling over P matches the PyTorch layout.
    P = d_in // d_model
    p["bn4s"] = jnp.tile(jnp.full((1, d_model), bn_scale, jnp.float32), (1, P))
    p["bn4b"] = jnp.tile(jnp.zeros((1, d_model), jnp.float32), (1, P))
    return p


def prepare(params, hyperedge_index, N, P, d_model):
    """One-time host prep: dense incidence, degrees, padding, bf16 weights, packed slabs."""
    d_in = P * d_model
    he = np.asarray(hyperedge_index)
    E = int(he[1].max()) + 1

    Np = _round_up(max(N, SUBLANE), SUBLANE)
    Ep = _round_up(max(E, LANE), LANE)
    Dp = _round_up(d_model, LANE)
    DIp = _round_up(d_in, LANE)

    # dense incidence, clamped to 0/1 (dedup duplicate (node, edge) pairs)
    inc = np.zeros((Np, Ep), np.float32)
    inc[he[0], he[1]] = 1.0
    node_deg = inc.sum(1, keepdims=True)                          # (Np, 1)
    edge_deg = inc.sum(0, keepdims=True).T                        # (Ep, 1)
    d_inv = np.where(node_deg > 0, 1.0 / np.maximum(node_deg, 1.0), 0.0).astype(np.float32)
    b_inv = np.where(edge_deg > 0, 1.0 / np.maximum(edge_deg, 1.0), 0.0).astype(np.float32)

    pnp = {k: np.asarray(v, np.float32) for k, v in params.items()}

    def padw(w, r, c):
        out = np.zeros((r, c), np.float32)
        out[:w.shape[0], :w.shape[1]] = w
        return out

    def pad_head_blocks(w, F, Fp, heads):
        out = np.zeros((Dp, heads * Fp), np.float32)
        for hd in range(heads):
            out[:w.shape[0], hd * Fp:hd * Fp + F] = w[:, hd * F:(hd + 1) * F]
        return out

    def att_blocks(att, F, Fp, heads, rows=SUBLANE):
        ax = np.zeros((rows, heads * Fp), np.float32)
        ae = np.zeros((rows, heads * Fp), np.float32)
        for hd in range(heads):
            ax[hd, hd * Fp:hd * Fp + F] = att[hd, :F]
            ae[hd, hd * Fp:hd * Fp + F] = att[hd, F:]
        return ax, ae

    def pad_row(v, width, fill=0.0):
        out = np.full((width,), fill, np.float32)
        v = np.asarray(v, np.float32).reshape(-1)
        out[:v.shape[0]] = v
        return out

    F = d_model
    ax1, ae1 = att_blocks(pnp["att1"], F, Dp, 4)
    ax2, ae2 = att_blocks(pnp["att2"], F, Dp, 1)

    vdm = np.stack([
        pad_row(pnp["b1"], Dp),
        pad_row(pnp["bn1s"], Dp, 1.0), pad_row(pnp["bn1b"], Dp),
        pad_row(pnp["hb1"], Dp),
        pad_row(pnp["bn2s"], Dp, 1.0), pad_row(pnp["bn2b"], Dp),
        pad_row(pnp["hb2"], Dp),
        pad_row(pnp["bn3s"], Dp, 1.0), pad_row(pnp["bn3b"], Dp),
    ])
    vdin = np.stack([
        pad_row(pnp["b2"], DIp),
        pad_row(pnp["bn4s"], DIp, 1.0), pad_row(pnp["bn4b"], DIp),
    ])

    return dict(
        N=N, d_in=d_in, P=P, d_model=d_model, Np=Np, Ep=Ep, Dp=Dp, DIp=DIp,
        inc=jnp.asarray(inc, jnp.bfloat16),
        d_inv=jnp.asarray(d_inv), b_inv=jnp.asarray(b_inv),
        w1=jnp.asarray(padw(pnp["w1_t"], DIp, Dp), jnp.bfloat16),
        wl1=jnp.asarray(pad_head_blocks(pnp["wl1_t"], F, Dp, 4), jnp.bfloat16),
        wl2=jnp.asarray(pad_head_blocks(pnp["wl2_t"], F, Dp, 1), jnp.bfloat16),
        w2=jnp.asarray(padw(pnp["w2_t"], Dp, DIp), jnp.bfloat16),
        ax1=jnp.asarray(ax1), ae1=jnp.asarray(ae1),
        ax2=jnp.asarray(ax2), ae2=jnp.asarray(ae2),
        vdm=jnp.asarray(vdm), vdin=jnp.asarray(vdin),
    )


def _vmem_limit_bytes():
    """Generation-aware VMEM ceiling: leave Mosaic scratch headroom on every chip."""
    try:
        cap = int(pltpu.get_tpu_info().vmem_capacity_bytes)
    except Exception:
        cap = 128 * 1024 * 1024
    # ~52 MiB on v7x (64 MiB physical), ~112 MiB on v5e/v6e (128 MiB physical).
    return max(32 * 1024 * 1024, min(cap * 7 // 8, cap - 12 * 1024 * 1024))


def hgat_forward(x, prep):
    """x: (N, P, d_model) float32."""
    N, P, d_model = x.shape
    d_in = P * d_model
    Np, DIp = prep["Np"], prep["DIp"]

    xf = jnp.zeros((Np, DIp), jnp.float32).at[:N, :d_in].set(x.reshape(N, d_in))

    inputs = (xf, prep["inc"], prep["d_inv"], prep["b_inv"],
              prep["w1"], prep["wl1"], prep["wl2"], prep["w2"],
              prep["ax1"], prep["ae1"], prep["ax2"], prep["ae2"],
              prep["vdm"], prep["vdin"])

    out = pl.pallas_call(
        hgat_kernel,
        out_shape=jax.ShapeDtypeStruct((Np, DIp), jnp.float32),
        in_specs=[pl.BlockSpec(memory_space=pltpu.MemorySpace.VMEM)] * len(inputs),
        out_specs=pl.BlockSpec(memory_space=pltpu.MemorySpace.VMEM),
        compiler_params=pltpu.CompilerParams(vmem_limit_bytes=_vmem_limit_bytes()),
    )(*inputs)
    return out[:N, :d_in].reshape(N, P, d_model)


if __name__ == "__main__":
    key = jax.random.PRNGKey(0)
    kx, kp = jax.random.split(key)

    N, P, d_model = 8, 2, 32          # N stocks/nodes, P patches, d_model features
    d_in = P * d_model
    x = jax.random.normal(kx, (N, P, d_model), jnp.float32)

    # hyperedge_index: row 0 = node indices, row 1 = hyperedge indices (4 hyperedges)
    node_idx = np.array([0, 1, 2, 3, 4, 5, 6, 7, 0, 2, 4, 6], np.int32)
    edge_idx = np.array([0, 0, 1, 1, 2, 2, 3, 3, 1, 2, 3, 0], np.int32)
    hyperedge_index = np.stack([node_idx, edge_idx])

    params = make_params(kp, d_in, d_model)
    prep = prepare(params, hyperedge_index, N, P, d_model)   # static graph: prepared once

    out = hgat_forward(x, prep)
    jax.block_until_ready(out)
    assert out.shape == (N, P, d_model)
    assert bool(jnp.all(jnp.isfinite(out)))
    # TODO(synk): Dropout layers are identity (eval mode); PyTorch train-mode RNG masks not reproduced.
    print("KERNEL_OK")
</pallas_src>

<mosaic_0001>
module attributes {stable_mosaic.version = 11 : i64} {
  func.func @hgat_kernel(%arg0: memref<8x128xf32, #tpu.memory_space<vmem>>, %arg1: memref<8x128xbf16, #tpu.memory_space<vmem>>, %arg2: memref<8x1xf32, #tpu.memory_space<vmem>>, %arg3: memref<128x1xf32, #tpu.memory_space<vmem>>, %arg4: memref<128x128xbf16, #tpu.memory_space<vmem>>, %arg5: memref<128x512xbf16, #tpu.memory_space<vmem>>, %arg6: memref<128x128xbf16, #tpu.memory_space<vmem>>, %arg7: memref<128x128xbf16, #tpu.memory_space<vmem>>, %arg8: memref<8x512xf32, #tpu.memory_space<vmem>>, %arg9: memref<8x512xf32, #tpu.memory_space<vmem>>, %arg10: memref<8x128xf32, #tpu.memory_space<vmem>>, %arg11: memref<8x128xf32, #tpu.memory_space<vmem>>, %arg12: memref<9x128xf32, #tpu.memory_space<vmem>>, %arg13: memref<3x128xf32, #tpu.memory_space<vmem>>, %arg14: memref<8x128xf32, #tpu.memory_space<vmem>>) attributes {dimension_semantics = [], scalar_prefetch = 0 : i64, scratch_operands = 0 : i64, tpu.core_type = #tpu.core_type<tc>} {
    %c0 = arith.constant 0 : index
    %c0_0 = arith.constant 0 : index
    %0 = vector.load %arg0[%c0, %c0_0] : memref<8x128xf32, #tpu.memory_space<vmem>>, vector<8x128xf32>
    %c0_1 = arith.constant 0 : index
    %c0_2 = arith.constant 0 : index
    %1 = vector.load %arg1[%c0_1, %c0_2] : memref<8x128xbf16, #tpu.memory_space<vmem>>, vector<8x128xbf16>
    %2 = arith.extf %1 : vector<8x128xbf16> to vector<8x128xf32>
    %cst = arith.constant 1.000000e+00 : f32
    %3 = vector.broadcast %cst : f32 to vector<8x128xf32>
    %4 = arith.subf %2, %3 : vector<8x128xf32>
    %cst_3 = arith.constant 1.000000e+30 : f32
    %5 = vector.broadcast %cst_3 : f32 to vector<8x128xf32>
    %6 = arith.mulf %4, %5 : vector<8x128xf32>
    %c0_4 = arith.constant 0 : index
    %c0_5 = arith.constant 0 : index
    %7 = vector.load %arg2[%c0_4, %c0_5] : memref<8x1xf32, #tpu.memory_space<vmem>>, vector<8x1xf32>
    %c0_6 = arith.constant 0 : index
    %c0_7 = arith.constant 0 : index
    %8 = vector.load %arg3[%c0_6, %c0_7] : memref<128x1xf32, #tpu.memory_space<vmem>>, vector<128x1xf32>
    %c0_8 = arith.constant 0 : index
    %c0_9 = arith.constant 0 : index
    %9 = vector.load %arg12[%c0_8, %c0_9] : memref<9x128xf32, #tpu.memory_space<vmem>>, vector<1x128xf32>
    %c1 = arith.constant 1 : index
    %c0_10 = arith.constant 0 : index
    %10 = vector.load %arg12[%c1, %c0_10] : memref<9x128xf32, #tpu.memory_space<vmem>>, vector<1x128xf32>
    %c2 = arith.constant 2 : index
    %c0_11 = arith.constant 0 : index
    %11 = vector.load %arg12[%c2, %c0_11] : memref<9x128xf32, #tpu.memory_space<vmem>>, vector<1x128xf32>
    %c3 = arith.constant 3 : index
    %c0_12 = arith.constant 0 : index
    %12 = vector.load %arg12[%c3, %c0_12] : memref<9x128xf32, #tpu.memory_space<vmem>>, vector<1x128xf32>
    %c4 = arith.constant 4 : index
    %c0_13 = arith.constant 0 : index
    %13 = vector.load %arg12[%c4, %c0_13] : memref<9x128xf32, #tpu.memory_space<vmem>>, vector<1x128xf32>
    %c5 = arith.constant 5 : index
    %c0_14 = arith.constant 0 : index
    %14 = vector.load %arg12[%c5, %c0_14] : memref<9x128xf32, #tpu.memory_space<vmem>>, vector<1x128xf32>
    %c6 = arith.constant 6 : index
    %c0_15 = arith.constant 0 : index
    %15 = vector.load %arg12[%c6, %c0_15] : memref<9x128xf32, #tpu.memory_space<vmem>>, vector<1x128xf32>
    %c7 = arith.constant 7 : index
    %c0_16 = arith.constant 0 : index
    %16 = vector.load %arg12[%c7, %c0_16] : memref<9x128xf32, #tpu.memory_space<vmem>>, vector<1x128xf32>
    %c8 = arith.constant 8 : index
    %c0_17 = arith.constant 0 : index
    %17 = vector.load %arg12[%c8, %c0_17] : memref<9x128xf32, #tpu.memory_space<vmem>>, vector<1x128xf32>
    %c0_18 = arith.constant 0 : index
    %c0_19 = arith.constant 0 : index
    %18 = vector.load %arg13[%c0_18, %c0_19] : memref<3x128xf32, #tpu.memory_space<vmem>>, vector<1x128xf32>
    %c1_20 = arith.constant 1 : index
    %c0_21 = arith.constant 0 : index
    %19 = vector.load %arg13[%c1_20, %c0_21] : memref<3x128xf32, #tpu.memory_space<vmem>>, vector<1x128xf32>
    %c2_22 = arith.constant 2 : index
    %c0_23 = arith.constant 0 : index
    %20 = vector.load %arg13[%c2_22, %c0_23] : memref<3x128xf32, #tpu.memory_space<vmem>>, vector<1x128xf32>
    %21 = arith.truncf %0 : vector<8x128xf32> to vector<8x128xbf16>
    %c0_24 = arith.constant 0 : index
    %c0_25 = arith.constant 0 : index
    %22 = vector.load %arg4[%c0_24, %c0_25] : memref<128x128xbf16, #tpu.memory_space<vmem>>, vector<128x128xbf16>
    %cst_26 = arith.constant dense<0.000000e+00> : vector<8x128xf32>
    %23 = tpu.matmul %21, %22, %cst_26 {dimension_numbers = #tpu.dot_dimension_numbers<[1], [0], [0], [1], [0, 0, 1, 1], [], []>} : vector<8x128xbf16>, vector<128x128xbf16>, vector<8x128xf32> -> vector<8x128xf32>
    %24 = vector.broadcast %9 : vector<1x128xf32> to vector<8x128xf32>
    %25 = arith.addf %23, %24 : vector<8x128xf32>
    %cst_27 = arith.constant 0.000000e+00 : f32
    %26 = vector.broadcast %cst_27 : f32 to vector<8x128xf32>
    %27 = arith.cmpf oge, %25, %26 : vector<8x128xf32>
    %cst_28 = arith.constant 2.000000e-01 : f32
    %28 = vector.broadcast %cst_28 : f32 to vector<8x128xf32>
    %29 = arith.mulf %28, %25 : vector<8x128xf32>
    %30 = arith.select %27, %25, %29 : vector<8x128xi1>, vector<8x128xf32>
    %31 = vector.broadcast %10 : vector<1x128xf32> to vector<8x128xf32>
    %32 = arith.mulf %30, %31 : vector<8x128xf32>
    %33 = vector.broadcast %11 : vector<1x128xf32> to vector<8x128xf32>
    %34 = arith.addf %32, %33 : vector<8x128xf32>
    %c0_29 = arith.constant 0 : index
    %c0_30 = arith.constant 0 : index
    %35 = vector.load %arg5[%c0_29, %c0_30] : memref<128x512xbf16, #tpu.memory_space<vmem>>, vector<128x512xbf16>
    %c0_31 = arith.constant 0 : index
    %c0_32 = arith.constant 0 : index
    %36 = vector.load %arg8[%c0_31, %c0_32] : memref<8x512xf32, #tpu.memory_space<vmem>>, vector<8x512xf32>
    %c0_33 = arith.constant 0 : index
    %c0_34 = arith.constant 0 : index
    %37 = vector.load %arg9[%c0_33, %c0_34] : memref<8x512xf32, #tpu.memory_space<vmem>>, vector<8x512xf32>
    %38 = arith.truncf %34 : vector<8x128xf32> to vector<8x128xbf16>
    %cst_35 = arith.constant dense<0.000000e+00> : vector<8x512xf32>
    %39 = tpu.matmul %38, %35, %cst_35 {dimension_numbers = #tpu.dot_dimension_numbers<[1], [0], [0], [1], [0, 0, 1, 1], [], []>} : vector<8x128xbf16>, vector<128x512xbf16>, vector<8x512xf32> -> vector<8x512xf32>
    %40 = arith.truncf %39 : vector<8x512xf32> to vector<8x512xbf16>
    %cst_36 = arith.constant dense<0.000000e+00> : vector<8x8xf32>
    %41 = tpu.matmul %39, %36, %cst_36 {dimension_numbers = #tpu.dot_dimension_numbers<[1], [1], [0], [0], [0, 0, 1, 0], [], []>} : vector<8x512xf32>, vector<8x512xf32>, vector<8x8xf32> -> vector<8x8xf32>
    %cst_37 = arith.constant dense<0.000000e+00> : vector<8x8xf32>
    %42 = tpu.matmul %37, %39, %cst_37 {dimension_numbers = #tpu.dot_dimension_numbers<[1], [1], [0], [0], [0, 0, 1, 0], [], []>} : vector<8x512xf32>, vector<8x512xf32>, vector<8x8xf32> -> vector<8x8xf32>
    %43 = arith.truncf %42 : vector<8x8xf32> to vector<8x8xbf16>
    %cst_38 = arith.constant dense<0.000000e+00> : vector<8x128xf32>
    %44 = tpu.matmul %43, %1, %cst_38 {dimension_numbers = #tpu.dot_dimension_numbers<[1], [0], [0], [1], [0, 0, 1, 1], [], []>} : vector<8x8xbf16>, vector<8x128xbf16>, vector<8x128xf32> -> vector<8x128xf32>
    %cst_39 = arith.constant 2.500000e-01 : f32
    %45 = vector.broadcast %cst_39 : f32 to vector<8x1xf32>
    %46 = arith.mulf %7, %45 : vector<8x1xf32>
    %cst_40 = arith.constant 0.000000e+00 : f32
    %47 = vector.broadcast %cst_40 : f32 to vector<8x128xf32>
    %48 = vector.extract_strided_slice %40 {offsets = [0, 0], sizes = [8, 128], strides = [1, 1]} : vector<8x512xbf16> to vector<8x128xbf16>
    %49 = vector.extract_strided_slice %41 {offsets = [0, 0], sizes = [8, 1], strides = [1, 1]} : vector<8x8xf32> to vector<8x1xf32>
    %50 = vector.extract_strided_slice %44 {offsets = [0, 0], sizes = [1, 128], strides = [1, 1]} : vector<8x128xf32> to vector<1x128xf32>
    %51 = vector.broadcast %49 : vector<8x1xf32> to vector<8x128xf32>
    %52 = vector.broadcast %50 : vector<1x128xf32> to vector<8x128xf32>
    %53 = arith.addf %51, %52 : vector<8x128xf32>
    %cst_41 = arith.constant 0.000000e+00 : f32
    %54 = vector.broadcast %cst_41 : f32 to vector<8x128xf32>
    %55 = arith.cmpf oge, %53, %54 : vector<8x128xf32>
    %cst_42 = arith.constant 2.000000e-01 : f32
    %56 = vector.broadcast %cst_42 : f32 to vector<8x128xf32>
    %57 = arith.mulf %56, %53 : vector<8x128xf32>
    %58 = arith.select %55, %53, %57 : vector<8x128xi1>, vector<8x128xf32>
    %59 = arith.addf %58, %6 : vector<8x128xf32>
    %cst_43 = arith.constant dense<0xFF800000> : vector<8xf32>
    %60 = vector.multi_reduction <maximumf>, %59, %cst_43 [1] : vector<8x128xf32> to vector<8xf32>
    %61 = vector.shape_cast %60 : vector<8xf32> to vector<8x1xf32>
    %62 = vector.broadcast %61 : vector<8x1xf32> to vector<8x128xf32>
    %63 = arith.subf %59, %62 : vector<8x128xf32>
    %64 = math.exp %63 : vector<8x128xf32>
    %65 = arith.mulf %64, %2 : vector<8x128xf32>
    %cst_44 = arith.constant dense<0.000000e+00> : vector<8xf32>
    %66 = vector.multi_reduction <add>, %65, %cst_44 [1] : vector<8x128xf32> to vector<8xf32>
    %67 = vector.shape_cast %66 : vector<8xf32> to vector<8x1xf32>
    %cst_45 = arith.constant 1.000000e-30 : f32
    %68 = vector.broadcast %cst_45 : f32 to vector<8x1xf32>
    %69 = arith.maximumf %67, %68 : vector<8x1xf32>
    %70 = tpu.reciprocal %69 {approx = true} : vector<8x1xf32> -> vector<8x1xf32>
    %71 = vector.broadcast %70 : vector<8x1xf32> to vector<8x128xf32>
    %72 = arith.mulf %65, %71 : vector<8x128xf32>
    %73 = arith.truncf %72 : vector<8x128xf32> to vector<8x128xbf16>
    %cst_46 = arith.constant dense<0.000000e+00> : vector<128x128xf32>
    %74 = tpu.matmul %73, %48, %cst_46 {dimension_numbers = #tpu.dot_dimension_numbers<[0], [0], [1], [1], [0, 1, 1, 1], [], []>} : vector<8x128xbf16>, vector<8x128xbf16>, vector<128x128xf32> -> vector<128x128xf32>
    %75 = vector.broadcast %8 : vector<128x1xf32> to vector<128x128xf32>
    %76 = arith.mulf %74, %75 : vector<128x128xf32>
    %77 = arith.truncf %76 : vector<128x128xf32> to vector<128x128xbf16>
    %cst_47 = arith.constant dense<0.000000e+00> : vector<8x128xf32>
    %78 = tpu.matmul %73, %77, %cst_47 {dimension_numbers = #tpu.dot_dimension_numbers<[1], [0], [0], [1], [0, 0, 1, 1], [], []>} : vector<8x128xbf16>, vector<128x128xbf16>, vector<8x128xf32> -> vector<8x128xf32>
    %79 = arith.addf %47, %78 : vector<8x128xf32>
    %80 = vector.extract_strided_slice %40 {offsets = [0, 128], sizes = [8, 128], strides = [1, 1]} : vector<8x512xbf16> to vector<8x128xbf16>
    %81 = vector.extract_strided_slice %41 {offsets = [0, 1], sizes = [8, 1], strides = [1, 1]} : vector<8x8xf32> to vector<8x1xf32>
    %82 = vector.extract_strided_slice %44 {offsets = [1, 0], sizes = [1, 128], strides = [1, 1]} : vector<8x128xf32> to vector<1x128xf32>
    %83 = vector.broadcast %81 : vector<8x1xf32> to vector<8x128xf32>
    %84 = vector.broadcast %82 : vector<1x128xf32> to vector<8x128xf32>
    %85 = arith.addf %83, %84 : vector<8x128xf32>
    %cst_48 = arith.constant 0.000000e+00 : f32
    %86 = vector.broadcast %cst_48 : f32 to vector<8x128xf32>
    %87 = arith.cmpf oge, %85, %86 : vector<8x128xf32>
    %cst_49 = arith.constant 2.000000e-01 : f32
    %88 = vector.broadcast %cst_49 : f32 to vector<8x128xf32>
    %89 = arith.mulf %88, %85 : vector<8x128xf32>
    %90 = arith.select %87, %85, %89 : vector<8x128xi1>, vector<8x128xf32>
    %91 = arith.addf %90, %6 : vector<8x128xf32>
    %cst_50 = arith.constant dense<0xFF800000> : vector<8xf32>
    %92 = vector.multi_reduction <maximumf>, %91, %cst_50 [1] : vector<8x128xf32> to vector<8xf32>
    %93 = vector.shape_cast %92 : vector<8xf32> to vector<8x1xf32>
    %94 = vector.broadcast %93 : vector<8x1xf32> to vector<8x128xf32>
    %95 = arith.subf %91, %94 : vector<8x128xf32>
    %96 = math.exp %95 : vector<8x128xf32>
    %97 = arith.mulf %96, %2 : vector<8x128xf32>
    %cst_51 = arith.constant dense<0.000000e+00> : vector<8xf32>
    %98 = vector.multi_reduction <add>, %97, %cst_51 [1] : vector<8x128xf32> to vector<8xf32>
    %99 = vector.shape_cast %98 : vector<8xf32> to vector<8x1xf32>
    %cst_52 = arith.constant 1.000000e-30 : f32
    %100 = vector.broadcast %cst_52 : f32 to vector<8x1xf32>
    %101 = arith.maximumf %99, %100 : vector<8x1xf32>
    %102 = tpu.reciprocal %101 {approx = true} : vector<8x1xf32> -> vector<8x1xf32>
    %103 = vector.broadcast %102 : vector<8x1xf32> to vector<8x128xf32>
    %104 = arith.mulf %97, %103 : vector<8x128xf32>
    %105 = arith.truncf %104 : vector<8x128xf32> to vector<8x128xbf16>
    %cst_53 = arith.constant dense<0.000000e+00> : vector<128x128xf32>
    %106 = tpu.matmul %105, %80, %cst_53 {dimension_numbers = #tpu.dot_dimension_numbers<[0], [0], [1], [1], [0, 1, 1, 1], [], []>} : vector<8x128xbf16>, vector<8x128xbf16>, vector<128x128xf32> -> vector<128x128xf32>
    %107 = vector.broadcast %8 : vector<128x1xf32> to vector<128x128xf32>
    %108 = arith.mulf %106, %107 : vector<128x128xf32>
    %109 = arith.truncf %108 : vector<128x128xf32> to vector<128x128xbf16>
    %cst_54 = arith.constant dense<0.000000e+00> : vector<8x128xf32>
    %110 = tpu.matmul %105, %109, %cst_54 {dimension_numbers = #tpu.dot_dimension_numbers<[1], [0], [0], [1], [0, 0, 1, 1], [], []>} : vector<8x128xbf16>, vector<128x128xbf16>, vector<8x128xf32> -> vector<8x128xf32>
    %111 = arith.addf %79, %110 : vector<8x128xf32>
    %112 = vector.extract_strided_slice %40 {offsets = [0, 256], sizes = [8, 128], strides = [1, 1]} : vector<8x512xbf16> to vector<8x128xbf16>
    %113 = vector.extract_strided_slice %41 {offsets = [0, 2], sizes = [8, 1], strides = [1, 1]} : vector<8x8xf32> to vector<8x1xf32>
    %114 = vector.extract_strided_slice %44 {offsets = [2, 0], sizes = [1, 128], strides = [1, 1]} : vector<8x128xf32> to vector<1x128xf32>
    %115 = vector.broadcast %113 : vector<8x1xf32> to vector<8x128xf32>
    %116 = vector.broadcast %114 : vector<1x128xf32> to vector<8x128xf32>
    %117 = arith.addf %115, %116 : vector<8x128xf32>
    %cst_55 = arith.constant 0.000000e+00 : f32
    %118 = vector.broadcast %cst_55 : f32 to vector<8x128xf32>
    %119 = arith.cmpf oge, %117, %118 : vector<8x128xf32>
    %cst_56 = arith.constant 2.000000e-01 : f32
    %120 = vector.broadcast %cst_56 : f32 to vector<8x128xf32>
    %121 = arith.mulf %120, %117 : vector<8x128xf32>
    %122 = arith.select %119, %117, %121 : vector<8x128xi1>, vector<8x128xf32>
    %123 = arith.addf %122, %6 : vector<8x128xf32>
    %cst_57 = arith.constant dense<0xFF800000> : vector<8xf32>
    %124 = vector.multi_reduction <maximumf>, %123, %cst_57 [1] : vector<8x128xf32> to vector<8xf32>
    %125 = vector.shape_cast %124 : vector<8xf32> to vector<8x1xf32>
    %126 = vector.broadcast %125 : vector<8x1xf32> to vector<8x128xf32>
    %127 = arith.subf %123, %126 : vector<8x128xf32>
    %128 = math.exp %127 : vector<8x128xf32>
    %129 = arith.mulf %128, %2 : vector<8x128xf32>
    %cst_58 = arith.constant dense<0.000000e+00> : vector<8xf32>
    %130 = vector.multi_reduction <add>, %129, %cst_58 [1] : vector<8x128xf32> to vector<8xf32>
    %131 = vector.shape_cast %130 : vector<8xf32> to vector<8x1xf32>
    %cst_59 = arith.constant 1.000000e-30 : f32
    %132 = vector.broadcast %cst_59 : f32 to vector<8x1xf32>
    %133 = arith.maximumf %131, %132 : vector<8x1xf32>
    %134 = tpu.reciprocal %133 {approx = true} : vector<8x1xf32> -> vector<8x1xf32>
    %135 = vector.broadcast %134 : vector<8x1xf32> to vector<8x128xf32>
    %136 = arith.mulf %129, %135 : vector<8x128xf32>
    %137 = arith.truncf %136 : vector<8x128xf32> to vector<8x128xbf16>
    %cst_60 = arith.constant dense<0.000000e+00> : vector<128x128xf32>
    %138 = tpu.matmul %137, %112, %cst_60 {dimension_numbers = #tpu.dot_dimension_numbers<[0], [0], [1], [1], [0, 1, 1, 1], [], []>} : vector<8x128xbf16>, vector<8x128xbf16>, vector<128x128xf32> -> vector<128x128xf32>
    %139 = vector.broadcast %8 : vector<128x1xf32> to vector<128x128xf32>
    %140 = arith.mulf %138, %139 : vector<128x128xf32>
    %141 = arith.truncf %140 : vector<128x128xf32> to vector<128x128xbf16>
    %cst_61 = arith.constant dense<0.000000e+00> : vector<8x128xf32>
    %142 = tpu.matmul %137, %141, %cst_61 {dimension_numbers = #tpu.dot_dimension_numbers<[1], [0], [0], [1], [0, 0, 1, 1], [], []>} : vector<8x128xbf16>, vector<128x128xbf16>, vector<8x128xf32> -> vector<8x128xf32>
    %143 = arith.addf %111, %142 : vector<8x128xf32>
    %144 = vector.extract_strided_slice %40 {offsets = [0, 384], sizes = [8, 128], strides = [1, 1]} : vector<8x512xbf16> to vector<8x128xbf16>
    %145 = vector.extract_strided_slice %41 {offsets = [0, 3], sizes = [8, 1], strides = [1, 1]} : vector<8x8xf32> to vector<8x1xf32>
    %146 = vector.extract_strided_slice %44 {offsets = [3, 0], sizes = [1, 128], strides = [1, 1]} : vector<8x128xf32> to vector<1x128xf32>
    %147 = vector.broadcast %145 : vector<8x1xf32> to vector<8x128xf32>
    %148 = vector.broadcast %146 : vector<1x128xf32> to vector<8x128xf32>
    %149 = arith.addf %147, %148 : vector<8x128xf32>
    %cst_62 = arith.constant 0.000000e+00 : f32
    %150 = vector.broadcast %cst_62 : f32 to vector<8x128xf32>
    %151 = arith.cmpf oge, %149, %150 : vector<8x128xf32>
    %cst_63 = arith.constant 2.000000e-01 : f32
    %152 = vector.broadcast %cst_63 : f32 to vector<8x128xf32>
    %153 = arith.mulf %152, %149 : vector<8x128xf32>
    %154 = arith.select %151, %149, %153 : vector<8x128xi1>, vector<8x128xf32>
    %155 = arith.addf %154, %6 : vector<8x128xf32>
    %cst_64 = arith.constant dense<0xFF800000> : vector<8xf32>
    %156 = vector.multi_reduction <maximumf>, %155, %cst_64 [1] : vector<8x128xf32> to vector<8xf32>
    %157 = vector.shape_cast %156 : vector<8xf32> to vector<8x1xf32>
    %158 = vector.broadcast %157 : vector<8x1xf32> to vector<8x128xf32>
    %159 = arith.subf %155, %158 : vector<8x128xf32>
    %160 = math.exp %159 : vector<8x128xf32>
    %161 = arith.mulf %160, %2 : vector<8x128xf32>
    %cst_65 = arith.constant dense<0.000000e+00> : vector<8xf32>
    %162 = vector.multi_reduction <add>, %161, %cst_65 [1] : vector<8x128xf32> to vector<8xf32>
    %163 = vector.shape_cast %162 : vector<8xf32> to vector<8x1xf32>
    %cst_66 = arith.constant 1.000000e-30 : f32
    %164 = vector.broadcast %cst_66 : f32 to vector<8x1xf32>
    %165 = arith.maximumf %163, %164 : vector<8x1xf32>
    %166 = tpu.reciprocal %165 {approx = true} : vector<8x1xf32> -> vector<8x1xf32>
    %167 = vector.broadcast %166 : vector<8x1xf32> to vector<8x128xf32>
    %168 = arith.mulf %161, %167 : vector<8x128xf32>
    %169 = arith.truncf %168 : vector<8x128xf32> to vector<8x128xbf16>
    %cst_67 = arith.constant dense<0.000000e+00> : vector<128x128xf32>
    %170 = tpu.matmul %169, %144, %cst_67 {dimension_numbers = #tpu.dot_dimension_numbers<[0], [0], [1], [1], [0, 1, 1, 1], [], []>} : vector<8x128xbf16>, vector<8x128xbf16>, vector<128x128xf32> -> vector<128x128xf32>
    %171 = vector.broadcast %8 : vector<128x1xf32> to vector<128x128xf32>
    %172 = arith.mulf %170, %171 : vector<128x128xf32>
    %173 = arith.truncf %172 : vector<128x128xf32> to vector<128x128xbf16>
    %cst_68 = arith.constant dense<0.000000e+00> : vector<8x128xf32>
    %174 = tpu.matmul %169, %173, %cst_68 {dimension_numbers = #tpu.dot_dimension_numbers<[1], [0], [0], [1], [0, 0, 1, 1], [], []>} : vector<8x128xbf16>, vector<128x128xbf16>, vector<8x128xf32> -> vector<8x128xf32>
    %175 = arith.addf %143, %174 : vector<8x128xf32>
    %176 = vector.broadcast %46 : vector<8x1xf32> to vector<8x128xf32>
    %177 = arith.mulf %175, %176 : vector<8x128xf32>
    %178 = vector.broadcast %12 : vector<1x128xf32> to vector<8x128xf32>
    %179 = arith.addf %177, %178 : vector<8x128xf32>
    %180 = arith.addf %34, %179 : vector<8x128xf32>
    %181 = vector.broadcast %13 : vector<1x128xf32> to vector<8x128xf32>
    %182 = arith.mulf %180, %181 : vector<8x128xf32>
    %183 = vector.broadcast %14 : vector<1x128xf32> to vector<8x128xf32>
    %184 = arith.addf %182, %183 : vector<8x128xf32>
    %c0_69 = arith.constant 0 : index
    %c0_70 = arith.constant 0 : index
    %185 = vector.load %arg6[%c0_69, %c0_70] : memref<128x128xbf16, #tpu.memory_space<vmem>>, vector<128x128xbf16>
    %c0_71 = arith.constant 0 : index
    %c0_72 = arith.constant 0 : index
    %186 = vector.load %arg10[%c0_71, %c0_72] : memref<8x128xf32, #tpu.memory_space<vmem>>, vector<8x128xf32>
    %c0_73 = arith.constant 0 : index
    %c0_74 = arith.constant 0 : index
    %187 = vector.load %arg11[%c0_73, %c0_74] : memref<8x128xf32, #tpu.memory_space<vmem>>, vector<8x128xf32>
    %188 = arith.truncf %184 : vector<8x128xf32> to vector<8x128xbf16>
    %cst_75 = arith.constant dense<0.000000e+00> : vector<8x128xf32>
    %189 = tpu.matmul %188, %185, %cst_75 {dimension_numbers = #tpu.dot_dimension_numbers<[1], [0], [0], [1], [0, 0, 1, 1], [], []>} : vector<8x128xbf16>, vector<128x128xbf16>, vector<8x128xf32> -> vector<8x128xf32>
    %190 = arith.truncf %189 : vector<8x128xf32> to vector<8x128xbf16>
    %cst_76 = arith.constant dense<0.000000e+00> : vector<8x8xf32>
    %191 = tpu.matmul %189, %186, %cst_76 {dimension_numbers = #tpu.dot_dimension_numbers<[1], [1], [0], [0], [0, 0, 1, 0], [], []>} : vector<8x128xf32>, vector<8x128xf32>, vector<8x8xf32> -> vector<8x8xf32>
    %cst_77 = arith.constant dense<0.000000e+00> : vector<8x8xf32>
    %192 = tpu.matmul %187, %189, %cst_77 {dimension_numbers = #tpu.dot_dimension_numbers<[1], [1], [0], [0], [0, 0, 1, 0], [], []>} : vector<8x128xf32>, vector<8x128xf32>, vector<8x8xf32> -> vector<8x8xf32>
    %193 = arith.truncf %192 : vector<8x8xf32> to vector<8x8xbf16>
    %cst_78 = arith.constant dense<0.000000e+00> : vector<8x128xf32>
    %194 = tpu.matmul %193, %1, %cst_78 {dimension_numbers = #tpu.dot_dimension_numbers<[1], [0], [0], [1], [0, 0, 1, 1], [], []>} : vector<8x8xbf16>, vector<8x128xbf16>, vector<8x128xf32> -> vector<8x128xf32>
    %cst_79 = arith.constant 1.000000e+00 : f32
    %195 = vector.broadcast %cst_79 : f32 to vector<8x1xf32>
    %196 = arith.mulf %7, %195 : vector<8x1xf32>
    %cst_80 = arith.constant 0.000000e+00 : f32
    %197 = vector.broadcast %cst_80 : f32 to vector<8x128xf32>
    %198 = vector.extract_strided_slice %191 {offsets = [0, 0], sizes = [8, 1], strides = [1, 1]} : vector<8x8xf32> to vector<8x1xf32>
    %199 = vector.extract_strided_slice %194 {offsets = [0, 0], sizes = [1, 128], strides = [1, 1]} : vector<8x128xf32> to vector<1x128xf32>
    %200 = vector.broadcast %198 : vector<8x1xf32> to vector<8x128xf32>
    %201 = vector.broadcast %199 : vector<1x128xf32> to vector<8x128xf32>
    %202 = arith.addf %200, %201 : vector<8x128xf32>
    %cst_81 = arith.constant 0.000000e+00 : f32
    %203 = vector.broadcast %cst_81 : f32 to vector<8x128xf32>
    %204 = arith.cmpf oge, %202, %203 : vector<8x128xf32>
    %cst_82 = arith.constant 2.000000e-01 : f32
    %205 = vector.broadcast %cst_82 : f32 to vector<8x128xf32>
    %206 = arith.mulf %205, %202 : vector<8x128xf32>
    %207 = arith.select %204, %202, %206 : vector<8x128xi1>, vector<8x128xf32>
    %208 = arith.addf %207, %6 : vector<8x128xf32>
    %cst_83 = arith.constant dense<0xFF800000> : vector<8xf32>
    %209 = vector.multi_reduction <maximumf>, %208, %cst_83 [1] : vector<8x128xf32> to vector<8xf32>
    %210 = vector.shape_cast %209 : vector<8xf32> to vector<8x1xf32>
    %211 = vector.broadcast %210 : vector<8x1xf32> to vector<8x128xf32>
    %212 = arith.subf %208, %211 : vector<8x128xf32>
    %213 = math.exp %212 : vector<8x128xf32>
    %214 = arith.mulf %213, %2 : vector<8x128xf32>
    %cst_84 = arith.constant dense<0.000000e+00> : vector<8xf32>
    %215 = vector.multi_reduction <add>, %214, %cst_84 [1] : vector<8x128xf32> to vector<8xf32>
    %216 = vector.shape_cast %215 : vector<8xf32> to vector<8x1xf32>
    %cst_85 = arith.constant 1.000000e-30 : f32
    %217 = vector.broadcast %cst_85 : f32 to vector<8x1xf32>
    %218 = arith.maximumf %216, %217 : vector<8x1xf32>
    %219 = tpu.reciprocal %218 {approx = true} : vector<8x1xf32> -> vector<8x1xf32>
    %220 = vector.broadcast %219 : vector<8x1xf32> to vector<8x128xf32>
    %221 = arith.mulf %214, %220 : vector<8x128xf32>
    %222 = arith.truncf %221 : vector<8x128xf32> to vector<8x128xbf16>
    %cst_86 = arith.constant dense<0.000000e+00> : vector<128x128xf32>
    %223 = tpu.matmul %222, %190, %cst_86 {dimension_numbers = #tpu.dot_dimension_numbers<[0], [0], [1], [1], [0, 1, 1, 1], [], []>} : vector<8x128xbf16>, vector<8x128xbf16>, vector<128x128xf32> -> vector<128x128xf32>
    %224 = vector.broadcast %8 : vector<128x1xf32> to vector<128x128xf32>
    %225 = arith.mulf %223, %224 : vector<128x128xf32>
    %226 = arith.truncf %225 : vector<128x128xf32> to vector<128x128xbf16>
    %cst_87 = arith.constant dense<0.000000e+00> : vector<8x128xf32>
    %227 = tpu.matmul %222, %226, %cst_87 {dimension_numbers = #tpu.dot_dimension_numbers<[1], [0], [0], [1], [0, 0, 1, 1], [], []>} : vector<8x128xbf16>, vector<128x128xbf16>, vector<8x128xf32> -> vector<8x128xf32>
    %228 = arith.addf %197, %227 : vector<8x128xf32>
    %229 = vector.broadcast %196 : vector<8x1xf32> to vector<8x128xf32>
    %230 = arith.mulf %228, %229 : vector<8x128xf32>
    %231 = vector.broadcast %15 : vector<1x128xf32> to vector<8x128xf32>
    %232 = arith.addf %230, %231 : vector<8x128xf32>
    %233 = arith.addf %184, %232 : vector<8x128xf32>
    %234 = vector.broadcast %16 : vector<1x128xf32> to vector<8x128xf32>
    %235 = arith.mulf %233, %234 : vector<8x128xf32>
    %236 = vector.broadcast %17 : vector<1x128xf32> to vector<8x128xf32>
    %237 = arith.addf %235, %236 : vector<8x128xf32>
    %238 = arith.truncf %237 : vector<8x128xf32> to vector<8x128xbf16>
    %c0_88 = arith.constant 0 : index
    %c0_89 = arith.constant 0 : index
    %239 = vector.load %arg7[%c0_88, %c0_89] : memref<128x128xbf16, #tpu.memory_space<vmem>>, vector<128x128xbf16>
    %cst_90 = arith.constant dense<0.000000e+00> : vector<8x128xf32>
    %240 = tpu.matmul %238, %239, %cst_90 {dimension_numbers = #tpu.dot_dimension_numbers<[1], [0], [0], [1], [0, 0, 1, 1], [], []>} : vector<8x128xbf16>, vector<128x128xbf16>, vector<8x128xf32> -> vector<8x128xf32>
    %241 = vector.broadcast %18 : vector<1x128xf32> to vector<8x128xf32>
    %242 = arith.addf %240, %241 : vector<8x128xf32>
    %cst_91 = arith.constant 0.000000e+00 : f32
    %243 = vector.broadcast %cst_91 : f32 to vector<8x128xf32>
    %244 = arith.cmpf oge, %242, %243 : vector<8x128xf32>
    %cst_92 = arith.constant 2.000000e-01 : f32
    %245 = vector.broadcast %cst_92 : f32 to vector<8x128xf32>
    %246 = arith.mulf %245, %242 : vector<8x128xf32>
    %247 = arith.select %244, %242, %246 : vector<8x128xi1>, vector<8x128xf32>
    %248 = arith.addf %0, %247 : vector<8x128xf32>
    %249 = vector.broadcast %19 : vector<1x128xf32> to vector<8x128xf32>
    %250 = arith.mulf %248, %249 : vector<8x128xf32>
    %251 = vector.broadcast %20 : vector<1x128xf32> to vector<8x128xf32>
    %252 = arith.addf %250, %251 : vector<8x128xf32>
    %c0_93 = arith.constant 0 : index
    %c0_94 = arith.constant 0 : index
    %253 = vector.load %arg14[%c0_93, %c0_94] : memref<8x128xf32, #tpu.memory_space<vmem>>, vector<8x128xf32>
    tpu.vector_store %arg14[%c0_93, %c0_94], %252 {strides = array<i32>} : memref<8x128xf32, #tpu.memory_space<vmem>>, vector<8x128xf32>,
    return
  }
}

</mosaic_0001>

<llo_original>
// kernel: tpu_custom_call.1
$region0: #{tpu_custom_call.1}
  #allocation0 [shape = 'u32[]', space=smem, size = 0x4, offset = 0x4, fixed_abs, tag = 'smem constant byte address 0x4 - core index']
  #allocation1 [shape = 'u32[144,128]{1,0:T(1,128)}', space=vmem, size = 0x12000, scoped, tag = 'internal scratch']
  %s0 = inlined_call_operand.hbm [shape: f32[8,128], index: 0, kind: input, shape index: {}]
  %s1 = inlined_call_operand.hbm [shape: bf16[8,128], index: 1, kind: input, shape index: {}]
  %s2 = inlined_call_operand.vmem [shape: f32[8,1], index: 2, kind: input, shape index: {}]
  %s3 = inlined_call_operand.vmem [shape: f32[128,1], index: 3, kind: input, shape index: {}]
  %s4 = inlined_call_operand.vmem [shape: bf16[128,128], index: 4, kind: input, shape index: {}]
  %s5 = inlined_call_operand.hbm [shape: bf16[128,512], index: 5, kind: input, shape index: {}]
  %s6 = inlined_call_operand.vmem [shape: bf16[128,128], index: 6, kind: input, shape index: {}]
  %s7 = inlined_call_operand.hbm [shape: bf16[128,128], index: 7, kind: input, shape index: {}]
  %s8 = inlined_call_operand.hbm [shape: f32[8,512], index: 8, kind: input, shape index: {}]
  %s9 = inlined_call_operand.hbm [shape: f32[8,512], index: 9, kind: input, shape index: {}]
  %s10 = inlined_call_operand.vmem [shape: f32[8,128], index: 10, kind: input, shape index: {}]
  %s11 = inlined_call_operand.hbm [shape: f32[8,128], index: 11, kind: input, shape index: {}]
  %s12 = inlined_call_operand.vmem [shape: f32[9,128], index: 12, kind: input, shape index: {}]
  %s13 = inlined_call_operand.vmem [shape: f32[3,128], index: 13, kind: input, shape index: {}]
  %s14 = inlined_call_operand.hbm [shape: f32[8,128], index: 14, kind: output, shape index: {}]
  %s15 = sld [smem:[#allocation0]]
  $region94: #{tpu_custom_call.1} parent=0
    _
  %s17 = ssub.s32 1, %s15
  %s18 = scalar_select 0, %s17, %s15
  $region1: #{tpu_custom_call.1} parent=0
    #allocation2 [shape = 'u8[4096]{0}', space=vmem, size = 0x1000, scoped, tag = 'input window, operand 0, single buffered']
    #allocation3 [shape = 's32[1]{0}', space=sflag, size = 0x4, scoped, tag = 'scoped memory for tpu_custom_call.1']
    #allocation4 [shape = 's32[1]{0}', space=sflag, size = 0x4, scoped, tag = 'scoped memory for tpu_custom_call.1']
    #allocation5 [shape = 'u8[2048]{0}', space=vmem, size = 0x800, scoped, tag = 'input window, operand 1, single buffered']
    #allocation6 [shape = 's32[1]{0}', space=sflag, size = 0x4, scoped, tag = 'scoped memory for tpu_custom_call.1']
    #allocation7 [shape = 'u8[131072]{0}', space=vmem, size = 0x20000, scoped, tag = 'input window, operand 5, single buffered']
    #allocation8 [shape = 'u8[32768]{0}', space=vmem, size = 0x8000, scoped, tag = 'input window, operand 7, single buffered']
    #allocation9 [shape = 's32[1]{0}', space=sflag, size = 0x4, scoped, tag = 'scoped memory for tpu_custom_call.1']
    #allocation10 [shape = 'u8[16384]{0}', space=vmem, size = 0x4000, scoped, tag = 'input window, operand 8, single buffered']
    #allocation11 [shape = 'u8[16384]{0}', space=vmem, size = 0x4000, scoped, tag = 'input window, operand 9, single buffered']
    #allocation12 [shape = 's32[1]{0}', space=sflag, size = 0x4, scoped, tag = 'scoped memory for tpu_custom_call.1']
    #allocation13 [shape = 'u8[4096]{0}', space=vmem, size = 0x1000, scoped, tag = 'input window, operand 11, single buffered']
    #allocation14 [shape = 'u8[4096]{0}', space=vmem, size = 0x1000, scoped, tag = 'output window, operand 0, single buffered']
    %19 = vsyncpa [#allocation3], 0
    %20 = vsyncpa [#allocation6], 0
    %21 = vsyncpa [#allocation9], 0
    %22 = vsyncpa [#allocation12], 0
    %23 = vsyncpa [#allocation4], 0
    // Predicated region
    $region2: #{tpu_custom_call.1} parent=1 // pred_check
      _
    $region3: #{tpu_custom_call.1} parent=1 // pred_check_branch
      %25 = sbr.rel (0) target = $region5
    $region4: #{tpu_custom_call.1} parent=1 // pred_region
      %s27 = ssub.s32 128, 128
      %28 = vsyncadd [#allocation3], %s27
      %s30 = sshll.u32 [#allocation2], 4
      %s31 = int_to_ptr.vmem [resolvable:$true] %s30
      %33 = dma.hbm_to_vmem [thread:$0]  %s0, 128, %s31, [#allocation3]
    $region5: #{tpu_custom_call.1} parent=1 // pred_fallthru
      _
    // Predicated region
    $region6: #{tpu_custom_call.1} parent=1 // pred_check
      _
    $region7: #{tpu_custom_call.1} parent=1 // pred_check_branch
      %35 = sbr.rel (0) target = $region9
    $region8: #{tpu_custom_call.1} parent=1 // pred_region
      %s37 = ssub.s32 64, 64
      %38 = vsyncadd [#allocation6], %s37
      %s40 = sshll.u32 [#allocation5], 4
      %s41 = int_to_ptr.vmem [resolvable:$true] %s40
      %43 = dma.hbm_to_vmem [thread:$0]  %s1, 64, %s41, [#allocation6]
    $region9: #{tpu_custom_call.1} parent=1 // pred_fallthru
      _
    // Predicated region
    $region10: #{tpu_custom_call.1} parent=1 // pred_check
      _
    $region11: #{tpu_custom_call.1} parent=1 // pred_check_branch
      %45 = sbr.rel (0) target = $region13
    $region12: #{tpu_custom_call.1} parent=1 // pred_region
      _
    $region13: #{tpu_custom_call.1} parent=1 // pred_fallthru
      _
    // Predicated region
    $region14: #{tpu_custom_call.1} parent=1 // pred_check
      _
    $region15: #{tpu_custom_call.1} parent=1 // pred_check_branch
      %47 = sbr.rel (0) target = $region17
    $region16: #{tpu_custom_call.1} parent=1 // pred_region
      _
    $region17: #{tpu_custom_call.1} parent=1 // pred_fallthru
      _
    // Predicated region
    $region18: #{tpu_custom_call.1} parent=1 // pred_check
      _
    $region19: #{tpu_custom_call.1} parent=1 // pred_check_branch
      %49 = sbr.rel (0) target = $region21
    $region20: #{tpu_custom_call.1} parent=1 // pred_region
      _
    $region21: #{tpu_custom_call.1} parent=1 // pred_fallthru
      _
    // Predicated region
    $region22: #{tpu_custom_call.1} parent=1 // pred_check
      _
    $region23: #{tpu_custom_call.1} parent=1 // pred_check_branch
      %51 = sbr.rel (0) target = $region25
    $region24: #{tpu_custom_call.1} parent=1 // pred_region
      %s53 = ssub.s32 4096, 4096
      %54 = vsyncadd [#allocation6], %s53
      %s55 = sshll.u32 [#allocation7], 4
      %s56 = int_to_ptr.vmem [resolvable:$true] %s55
      %61 = dma.hbm_to_vmem [thread:$0]  %s5, 4096, %s56, [#allocation6], 256, 256, 16
    $region25: #{tpu_custom_call.1} parent=1 // pred_fallthru
      _
    // Predicated region
    $region26: #{tpu_custom_call.1} parent=1 // pred_check
      _
    $region27: #{tpu_custom_call.1} parent=1 // pred_check_branch
      %63 = sbr.rel (0) target = $region29
    $region28: #{tpu_custom_call.1} parent=1 // pred_region
      _
    $region29: #{tpu_custom_call.1} parent=1 // pred_fallthru
      _
    // Predicated region
    $region30: #{tpu_custom_call.1} parent=1 // pred_check
      _
    $region31: #{tpu_custom_call.1} parent=1 // pred_check_branch
      %65 = sbr.rel (0) target = $region33
    $region32: #{tpu_custom_call.1} parent=1 // pred_region
      %s67 = ssub.s32 1024, 1024
      %68 = vsyncadd [#allocation9], %s67
      %s69 = sshll.u32 [#allocation8], 4
      %s70 = int_to_ptr.vmem [resolvable:$true] %s69
      %75 = dma.hbm_to_vmem [thread:$0]  %s7, 1024, %s70, [#allocation9], 64, 64, 4
    $region33: #{tpu_custom_call.1} parent=1 // pred_fallthru
      _
    // Predicated region
    $region34: #{tpu_custom_call.1} parent=1 // pred_check
      _
    $region35: #{tpu_custom_call.1} parent=1 // pred_check_branch
      %77 = sbr.rel (0) target = $region37
    $region36: #{tpu_custom_call.1} parent=1 // pred_region
      %s79 = ssub.s32 512, 512
      %80 = vsyncadd [#allocation9], %s79
      %s82 = sshll.u32 [#allocation10], 4
      %s83 = int_to_ptr.vmem [resolvable:$true] %s82
      %85 = dma.hbm_to_vmem [thread:$0]  %s8, 512, %s83, [#allocation9]
    $region37: #{tpu_custom_call.1} parent=1 // pred_fallthru
      _
    // Predicated region
    $region38: #{tpu_custom_call.1} parent=1 // pred_check
      _
    $region39: #{tpu_custom_call.1} parent=1 // pred_check_branch
      %87 = sbr.rel (0) target = $region41
    $region40: #{tpu_custom_call.1} parent=1 // pred_region
      %s89 = ssub.s32 512, 512
      %90 = vsyncadd [#allocation12], %s89
      %s92 = sshll.u32 [#allocation11], 4
      %s93 = int_to_ptr.vmem [resolvable:$true] %s92
      %95 = dma.hbm_to_vmem [thread:$0]  %s9, 512, %s93, [#allocation12]
    $region41: #{tpu_custom_call.1} parent=1 // pred_fallthru
      _
    // Predicated region
    $region42: #{tpu_custom_call.1} parent=1 // pred_check
      _
    $region43: #{tpu_custom_call.1} parent=1 // pred_check_branch
      %97 = sbr.rel (0) target = $region45
    $region44: #{tpu_custom_call.1} parent=1 // pred_region
      _
    $region45: #{tpu_custom_call.1} parent=1 // pred_fallthru
      _
    // Predicated region
    $region46: #{tpu_custom_call.1} parent=1 // pred_check
      _
    $region47: #{tpu_custom_call.1} parent=1 // pred_check_branch
      %99 = sbr.rel (0) target = $region49
    $region48: #{tpu_custom_call.1} parent=1 // pred_region
      %s101 = ssub.s32 128, 128
      %102 = vsyncadd [#allocation12], %s101
      %s104 = sshll.u32 [#allocation13], 4
      %s105 = int_to_ptr.vmem [resolvable:$true] %s104
      %107 = dma.hbm_to_vmem [thread:$0]  %s11, 128, %s105, [#allocation12]
    $region49: #{tpu_custom_call.1} parent=1 // pred_fallthru
      _
    // Predicated region
    $region50: #{tpu_custom_call.1} parent=1 // pred_check
      _
    $region51: #{tpu_custom_call.1} parent=1 // pred_check_branch
      %109 = sbr.rel (0) target = $region53
    $region52: #{tpu_custom_call.1} parent=1 // pred_region
      _
    $region53: #{tpu_custom_call.1} parent=1 // pred_fallthru
      _
    // Predicated region
    $region54: #{tpu_custom_call.1} parent=1 // pred_check
      _
    $region55: #{tpu_custom_call.1} parent=1 // pred_check_branch
      %111 = sbr.rel (0) target = $region57
    $region56: #{tpu_custom_call.1} parent=1 // pred_region
      _
    $region57: #{tpu_custom_call.1} parent=1 // pred_fallthru
      _
    // Predicated region
    $region58: #{tpu_custom_call.1} parent=1 // pred_check
      _
    $region59: #{tpu_custom_call.1} parent=1 // pred_check_branch
      %113 = sbr.rel (0) target = $region61
    $region60: #{tpu_custom_call.1} parent=1 // pred_region
      %114 = dma.done [#allocation3], 128
    $region61: #{tpu_custom_call.1} parent=1 // pred_fallthru
      _
    // Predicated region
    $region62: #{tpu_custom_call.1} parent=1 // pred_check
      _
    $region63: #{tpu_custom_call.1} parent=1 // pred_check_branch
      %116 = sbr.rel (0) target = $region65
    $region64: #{tpu_custom_call.1} parent=1 // pred_region
      %117 = dma.done [#allocation6], 64
    $region65: #{tpu_custom_call.1} parent=1 // pred_fallthru
      _
    // Predicated region
    $region66: #{tpu_custom_call.1} parent=1 // pred_check
      _
    $region67: #{tpu_custom_call.1} parent=1 // pred_check_branch
      %119 = sbr.rel (0) target = $region69
    $region68: #{tpu_custom_call.1} parent=1 // pred_region
      %120 = dma.done [#allocation6], 4096
    $region69: #{tpu_custom_call.1} parent=1 // pred_fallthru
      _
    // Predicated region
    $region70: #{tpu_custom_call.1} parent=1 // pred_check
      _
    $region71: #{tpu_custom_call.1} parent=1 // pred_check_branch
      %122 = sbr.rel (0) target = $region73
    $region72: #{tpu_custom_call.1} parent=1 // pred_region
      %123 = dma.done [#allocation9], 1024
    $region73: #{tpu_custom_call.1} parent=1 // pred_fallthru
      _
    // Predicated region
    $region74: #{tpu_custom_call.1} parent=1 // pred_check
      _
    $region75: #{tpu_custom_call.1} parent=1 // pred_check_branch
      %125 = sbr.rel (0) target = $region77
    $region76: #{tpu_custom_call.1} parent=1 // pred_region
      %126 = dma.done [#allocation9], 512
    $region77: #{tpu_custom_call.1} parent=1 // pred_fallthru
      _
    // Predicated region
    $region78: #{tpu_custom_call.1} parent=1 // pred_check
      _
    $region79: #{tpu_custom_call.1} parent=1 // pred_check_branch
      %128 = sbr.rel (0) target = $region81
    $region80: #{tpu_custom_call.1} parent=1 // pred_region
      %129 = dma.done [#allocation12], 512
    $region81: #{tpu_custom_call.1} parent=1 // pred_fallthru
      _
    // Predicated region
    $region82: #{tpu_custom_call.1} parent=1 // pred_check
      _
    $region83: #{tpu_custom_call.1} parent=1 // pred_check_branch
      %131 = sbr.rel (0) target = $region85
    $region84: #{tpu_custom_call.1} parent=1 // pred_region
      %132 = dma.done [#allocation12], 128
    $region85: #{tpu_custom_call.1} parent=1 // pred_fallthru
      _
    %v134 = vld [vmem:[#allocation2] sm:$0xff]
    %v135 = vld [vmem:[#allocation5] sm:$0xf]
    %v136 = vunpack.c.l.bf16 %v135
    %v137 = vsub.f32 %v136, 1.0
    %v138 = vmul.f32 %v137, 1e+30
    %v139 = vld [vmem:[%s2] sm:$0xff]
    %v140 = vld [vmem:[%s3] sm:$0xff]
    %v141 = vld [vmem:[%s3 + $0x8] sm:$0xff]
    %v142 = vld [vmem:[%s3 + $0x10] sm:$0xff]
    %v143 = vld [vmem:[%s3 + $0x18] sm:$0xff]
    %v144 = vld [vmem:[%s3 + $0x20] sm:$0xff]
    %v145 = vld [vmem:[%s3 + $0x28] sm:$0xff]
    %v146 = vld [vmem:[%s3 + $0x30] sm:$0xff]
    %v147 = vld [vmem:[%s3 + $0x38] sm:$0xff]
    %v148 = vld [vmem:[%s3 + $0x40] sm:$0xff]
    %v149 = vld [vmem:[%s3 + $0x48] sm:$0xff]
    %v150 = vld [vmem:[%s3 + $0x50] sm:$0xff]
    %v151 = vld [vmem:[%s3 + $0x58] sm:$0xff]
    %v152 = vld [vmem:[%s3 + $0x60] sm:$0xff]
    %v153 = vld [vmem:[%s3 + $0x68] sm:$0xff]
    %v154 = vld [vmem:[%s3 + $0x70] sm:$0xff]
    %v155 = vld [vmem:[%s3 + $0x78] sm:$0xff]
    %v156 = vld [vmem:[%s12] sm:$0x1]
    %v157 = vld [vmem:[%s12 + $0x1] sm:$0x1]
    %v158 = vld [vmem:[%s12 + $0x2] sm:$0x1]
    %v159 = vld [vmem:[%s12 + $0x3] sm:$0x1]
    %v160 = vld [vmem:[%s12 + $0x4] sm:$0x1]
    %v161 = vld [vmem:[%s12 + $0x5] sm:$0x1]
    %v162 = vld [vmem:[%s12 + $0x6] sm:$0x1]
    %v163 = vld [vmem:[%s12 + $0x7] sm:$0x1]
    %v164 = vld [vmem:[%s12 + $0x8] sm:$0x1]
    %v165 = vld [vmem:[%s13] sm:$0x1]
    %v166 = vld [vmem:[%s13 + $0x1] sm:$0x1]
    %v167 = vld [vmem:[%s13 + $0x2] sm:$0x1]
    %v168 = vpack.c.bf16 %v134, %v134
    %v169 = vld [vmem:[%s4] sm:$0xf]
    %v170 = vld [vmem:[%s4 + $0x4] sm:$0xf]
    %v171 = vld [vmem:[%s4 + $0x8] sm:$0xf]
    %v172 = vld [vmem:[%s4 + $0xc] sm:$0xf]
    %v173 = vld [vmem:[%s4 + $0x10] sm:$0xf]
    %v174 = vld [vmem:[%s4 + $0x14] sm:$0xf]
    %v175 = vld [vmem:[%s4 + $0x18] sm:$0xf]
    %v176 = vld [vmem:[%s4 + $0x1c] sm:$0xf]
    %v177 = vld [vmem:[%s4 + $0x20] sm:$0xf]
    %v178 = vld [vmem:[%s4 + $0x24] sm:$0xf]
    %v179 = vld [vmem:[%s4 + $0x28] sm:$0xf]
    %v180 = vld [vmem:[%s4 + $0x2c] sm:$0xf]
    %v181 = vld [vmem:[%s4 + $0x30] sm:$0xf]
    %v182 = vld [vmem:[%s4 + $0x34] sm:$0xf]
    %v183 = vld [vmem:[%s4 + $0x38] sm:$0xf]
    %v184 = vld [vmem:[%s4 + $0x3c] sm:$0xf]
    %v185 = vlaneseq
    %v186 = vshrl.u32 %v185, 7
    %v187 = vsub.s32 0, %v186
    %v188 = vrot.slane %v156, %v187
    %v205 = vunpack.c.l.b16 %v169
    %v206 = vunpack.c.l.b16 %v170
    %v207 = vunpack.c.l.b16 %v171
    %v208 = vunpack.c.l.b16 %v172
    %v209 = vunpack.c.l.b16 %v173
    %v210 = vunpack.c.l.b16 %v174
    %v211 = vunpack.c.l.b16 %v175
    %v212 = vunpack.c.l.b16 %v176
    %v213 = vunpack.c.l.b16 %v177
    %v214 = vunpack.c.l.b16 %v178
    %v215 = vunpack.c.l.b16 %v179
    %v216 = vunpack.c.l.b16 %v180
    %v217 = vunpack.c.l.b16 %v181
    %v218 = vunpack.c.l.b16 %v182
    %v219 = vunpack.c.l.b16 %v183
    %v220 = vunpack.c.l.b16 %v184
    %v221 = vpack.c.b16 %v206, %v205
    %v222 = vpack.c.b16 %v208, %v207
    %v223 = vpack.c.b16 %v210, %v209
    %v224 = vpack.c.b16 %v212, %v211
    %v225 = vpack.c.b16 %v214, %v213
    %v226 = vpack.c.b16 %v216, %v215
    %v227 = vpack.c.b16 %v218, %v217
    %v228 = vpack.c.b16 %v220, %v219
    %237 = vmatprep.subr.bf16.mxu0 0
    %238 = vmatpush1.bf16.msra.mxu0 %v228
    %239 = vmatprep.subr.bf16.mxu0 0
    %240 = vmatpush1.bf16.msra.mxu0 %v227
    %241 = vmatprep.subr.bf16.mxu0 0
    %242 = vmatpush1.bf16.msra.mxu0 %v226
    %243 = vmatprep.subr.bf16.mxu0 0
    %244 = vmatpush1.bf16.msra.mxu0 %v225
    %245 = vmatprep.subr.bf16.mxu0 0
    %246 = vmatpush1.bf16.msra.mxu0 %v224
    %247 = vmatprep.subr.bf16.mxu0 0
    %248 = vmatpush1.bf16.msra.mxu0 %v223
    %249 = vmatprep.subr.bf16.mxu0 0
    %250 = vmatpush1.bf16.msra.mxu0 %v222
    %251 = vmatprep.subr.bf16.mxu0 0
    %252 = vmatpush1.bf16.msra.mxu0 %v221
    %253 = vmatprep.subr.bf16.mxu0 0
    %254 = vmatpush2.bf16.msra.mxu0 0
    %255 = vmatprep.subr.bf16.mxu0 0
    %256 = vmatpush2.bf16.msra.mxu0 0
    %257 = vmatprep.subr.bf16.mxu0 0
    %258 = vmatpush2.bf16.msra.mxu0 0
    %259 = vmatprep.subr.bf16.mxu0 0
    %260 = vmatpush2.bf16.msra.mxu0 0
    %261 = vmatprep.subr.bf16.mxu0 0
    %262 = vmatpush2.bf16.msra.mxu0 0
    %263 = vmatprep.subr.bf16.mxu0 0
    %264 = vmatpush2.bf16.msra.mxu0 0
    %265 = vmatprep.subr.bf16.mxu0 0
    %266 = vmatpush2.bf16.msra.mxu0 0
    %267 = vmatprep.subr.bf16.mxu0 0
    %268 = vmatpush2.bf16.msra.mxu0 0
    %269 = vmatprep.mubr.bf16.mxu0 0
    %270 = vmatmul.mubr.bf16.gmra.mxu0 %v168
    %v271 = vpop.f32.mrf.mxu0
    %v272 = vadd.f32 %v188, %v271
    %v273 = vpop.f32.mrf.mxu0
    %v274 = vpop.f32.mrf.mxu0
    %v275 = vpop.f32.mrf.mxu0
    %276 = vdwg.mxu0
    %vm277 = vcmp.ge.f32.partialorder %v272, 0.0
    %v278 = vmul.f32 %v272, 0.2
    %v279 = vsel %vm277, %v272, %v278
    %v280 = vlaneseq
    %v281 = vshrl.u32 %v280, 7
    %v282 = vsub.s32 0, %v281
    %v283 = vrot.slane %v157, %v282
    %v284 = vmul.f32 %v279, %v283
    %v285 = vlaneseq
    %v286 = vshrl.u32 %v285, 7
    %v287 = vsub.s32 0, %v286
    %v288 = vrot.slane %v158, %v287
    %v289 = vadd.f32 %v284, %v288
    %v290 = vld [vmem:[#allocation7] sm:$0xff]
    %v291 = vld [vmem:[#allocation7 + $0x8] sm:$0xff]
    %v292 = vld [vmem:[#allocation7 + $0x10] sm:$0xff]
    %v293 = vld [vmem:[#allocation7 + $0x18] sm:$0xff]
    %v294 = vld [vmem:[#allocation7 + $0x20] sm:$0xff]
    %v295 = vld [vmem:[#allocation7 + $0x28] sm:$0xff]
    %v296 = vld [vmem:[#allocation7 + $0x30] sm:$0xff]
    %v297 = vld [vmem:[#allocation7 + $0x38] sm:$0xff]
    %v298 = vld [vmem:[#allocation7 + $0x40] sm:$0xff]
    %v299 = vld [vmem:[#allocation7 + $0x48] sm:$0xff]
    %v300 = vld [vmem:[#allocation7 + $0x50] sm:$0xff]
    %v301 = vld [vmem:[#allocation7 + $0x58] sm:$0xff]
    %v302 = vld [vmem:[#allocation7 + $0x60] sm:$0xff]
    %v303 = vld [vmem:[#allocation7 + $0x68] sm:$0xff]
    %v304 = vld [vmem:[#allocation7 + $0x70] sm:$0xff]
    %v305 = vld [vmem:[#allocation7 + $0x78] sm:$0xff]
    %v306 = vld [vmem:[#allocation7 + $0x80] sm:$0xff]
    %v307 = vld [vmem:[#allocation7 + $0x88] sm:$0xff]
    %v308 = vld [vmem:[#allocation7 + $0x90] sm:$0xff]
    %v309 = vld [vmem:[#allocation7 + $0x98] sm:$0xff]
    %v310 = vld [vmem:[#allocation7 + $0xa0] sm:$0xff]
    %v311 = vld [vmem:[#allocation7 + $0xa8] sm:$0xff]
    %v312 = vld [vmem:[#allocation7 + $0xb0] sm:$0xff]
    %v313 = vld [vmem:[#allocation7 + $0xb8] sm:$0xff]
    %v314 = vld [vmem:[#allocation7 + $0xc0] sm:$0xff]
    %v315 = vld [vmem:[#allocation7 + $0xc8] sm:$0xff]
    %v316 = vld [vmem:[#allocation7 + $0xd0] sm:$0xff]
    %v317 = vld [vmem:[#allocation7 + $0xd8] sm:$0xff]
    %v318 = vld [vmem:[#allocation7 + $0xe0] sm:$0xff]
    %v319 = vld [vmem:[#allocation7 + $0xe8] sm:$0xff]
    %v320 = vld [vmem:[#allocation7 + $0xf0] sm:$0xff]
    %v321 = vld [vmem:[#allocation7 + $0xf8] sm:$0xff]
    %v322 = vld [vmem:[#allocation10] sm:$0xff]
    %v323 = vld [vmem:[#allocation10 + $0x8] sm:$0xff]
    %v324 = vld [vmem:[#allocation10 + $0x10] sm:$0xff]
    %v325 = vld [vmem:[#allocation10 + $0x18] sm:$0xff]
    %v326 = vld [vmem:[#allocation11] sm:$0xff]
    %v327 = vld [vmem:[#allocation11 + $0x8] sm:$0xff]
    %v328 = vld [vmem:[#allocation11 + $0x10] sm:$0xff]
    %v329 = vld [vmem:[#allocation11 + $0x18] sm:$0xff]
    %v330 = vpack.c.bf16 %v289, %v289
    %v363 = vunpack.c.l.b16 %v290
    %v364 = vunpack.c.h.b16 %v290
    %v365 = vunpack.c.l.b16 %v291
    %v366 = vunpack.c.h.b16 %v291
    %v367 = vunpack.c.l.b16 %v292
    %v368 = vunpack.c.h.b16 %v292
    %v369 = vunpack.c.l.b16 %v293
    %v370 = vunpack.c.h.b16 %v293
    %v371 = vunpack.c.l.b16 %v294
    %v372 = vunpack.c.h.b16 %v294
    %v373 = vunpack.c.l.b16 %v295
    %v374 = vunpack.c.h.b16 %v295
    %v375 = vunpack.c.l.b16 %v296
    %v376 = vunpack.c.h.b16 %v296
    %v377 = vunpack.c.l.b16 %v297
    %v378 = vunpack.c.h.b16 %v297
    %v379 = vunpack.c.l.b16 %v298
    %v380 = vunpack.c.h.b16 %v298
    %v381 = vunpack.c.l.b16 %v299
    %v382 = vunpack.c.h.b16 %v299
    %v383 = vunpack.c.l.b16 %v300
    %v384 = vunpack.c.h.b16 %v300
    %v385 = vunpack.c.l.b16 %v301
    %v386 = vunpack.c.h.b16 %v301
    %v387 = vunpack.c.l.b16 %v302
    %v388 = vunpack.c.h.b16 %v302
    %v389 = vunpack.c.l.b16 %v303
    %v390 = vunpack.c.h.b16 %v303
    %v391 = vunpack.c.l.b16 %v304
    %v392 = vunpack.c.h.b16 %v304
    %v393 = vunpack.c.l.b16 %v305
    %v394 = vunpack.c.h.b16 %v305
    %v395 = vunpack.c.l.b16 %v306
    %v396 = vunpack.c.h.b16 %v306
    %v397 = vunpack.c.l.b16 %v307
    %v398 = vunpack.c.h.b16 %v307
    %v399 = vunpack.c.l.b16 %v308
    %v400 = vunpack.c.h.b16 %v308
    %v401 = vunpack.c.l.b16 %v309
    %v402 = vunpack.c.h.b16 %v309
    %v403 = vunpack.c.l.b16 %v310
    %v404 = vunpack.c.h.b16 %v310
    %v405 = vunpack.c.l.b16 %v311
    %v406 = vunpack.c.h.b16 %v311
    %v407 = vunpack.c.l.b16 %v312
    %v408 = vunpack.c.h.b16 %v312
    %v409 = vunpack.c.l.b16 %v313
    %v410 = vunpack.c.h.b16 %v313
    %v411 = vunpack.c.l.b16 %v314
    %v412 = vunpack.c.h.b16 %v314
    %v413 = vunpack.c.l.b16 %v315
    %v414 = vunpack.c.h.b16 %v315
    %v415 = vunpack.c.l.b16 %v316
    %v416 = vunpack.c.h.b16 %v316
    %v417 = vunpack.c.l.b16 %v317
    %v418 = vunpack.c.h.b16 %v317
    %v419 = vunpack.c.l.b16 %v318
    %v420 = vunpack.c.h.b16 %v318
    %v421 = vunpack.c.l.b16 %v319
    %v422 = vunpack.c.h.b16 %v319
    %v423 = vunpack.c.l.b16 %v320
    %v424 = vunpack.c.h.b16 %v320
    %v425 = vunpack.c.l.b16 %v321
    %v426 = vunpack.c.h.b16 %v321
    %v427 = vpack.c.b16 %v367, %v363
    %v428 = vpack.c.b16 %v368, %v364
    %v429 = vpack.c.b16 %v369, %v365
    %v430 = vpack.c.b16 %v370, %v366
    %v431 = vpack.c.b16 %v375, %v371
    %v432 = vpack.c.b16 %v376, %v372
    %v433 = vpack.c.b16 %v377, %v373
    %v434 = vpack.c.b16 %v378, %v374
    %v435 = vpack.c.b16 %v383, %v379
    %v436 = vpack.c.b16 %v384, %v380
    %v437 = vpack.c.b16 %v385, %v381
    %v438 = vpack.c.b16 %v386, %v382
    %v439 = vpack.c.b16 %v391, %v387
    %v440 = vpack.c.b16 %v392, %v388
    %v441 = vpack.c.b16 %v393, %v389
    %v442 = vpack.c.b16 %v394, %v390
    %v443 = vpack.c.b16 %v399, %v395
    %v444 = vpack.c.b16 %v400, %v396
    %v445 = vpack.c.b16 %v401, %v397
    %v446 = vpack.c.b16 %v402, %v398
    %v447 = vpack.c.b16 %v407, %v403
    %v448 = vpack.c.b16 %v408, %v404
    %v449 = vpack.c.b16 %v409, %v405
    %v450 = vpack.c.b16 %v410, %v406
    %v451 = vpack.c.b16 %v415, %v411
    %v452 = vpack.c.b16 %v416, %v412
    %v453 = vpack.c.b16 %v417, %v413
    %v454 = vpack.c.b16 %v418, %v414
    %v455 = vpack.c.b16 %v423, %v419
    %v456 = vpack.c.b16 %v424, %v420
    %v457 = vpack.c.b16 %v425, %v421
    %v458 = vpack.c.b16 %v426, %v422
    %491 = vmatprep.subr.bf16.mxu0 %v456
    %492 = vmatpush1.bf16.msra.mxu0 %v455
    %493 = vmatprep.subr.bf16.mxu0 %v452
    %494 = vmatpush1.bf16.msra.mxu0 %v451
    %495 = vmatprep.subr.bf16.mxu0 %v448
    %496 = vmatpush1.bf16.msra.mxu0 %v447
    %497 = vmatprep.subr.bf16.mxu0 %v444
    %498 = vmatpush1.bf16.msra.mxu0 %v443
    %499 = vmatprep.subr.bf16.mxu0 %v440
    %500 = vmatpush1.bf16.msra.mxu0 %v439
    %501 = vmatprep.subr.bf16.mxu0 %v436
    %502 = vmatpush1.bf16.msra.mxu0 %v435
    %503 = vmatprep.subr.bf16.mxu0 %v432
    %504 = vmatpush1.bf16.msra.mxu0 %v431
    %505 = vmatprep.subr.bf16.mxu0 %v428
    %506 = vmatpush1.bf16.msra.mxu0 %v427
    %507 = vmatprep.subr.bf16.mxu0 0
    %508 = vmatpush2.bf16.msra.mxu0 0
    %509 = vmatprep.subr.bf16.mxu0 0
    %510 = vmatpush2.bf16.msra.mxu0 0
    %511 = vmatprep.subr.bf16.mxu0 0
    %512 = vmatpush2.bf16.msra.mxu0 0
    %513 = vmatprep.subr.bf16.mxu0 0
    %514 = vmatpush2.bf16.msra.mxu0 0
    %515 = vmatprep.subr.bf16.mxu0 0
    %516 = vmatpush2.bf16.msra.mxu0 0
    %517 = vmatprep.subr.bf16.mxu0 0
    %518 = vmatpush2.bf16.msra.mxu0 0
    %519 = vmatprep.subr.bf16.mxu0 0
    %520 = vmatpush2.bf16.msra.mxu0 0
    %521 = vmatprep.subr.bf16.mxu0 0
    %522 = vmatpush2.bf16.msra.mxu0 0
    %523 = vmatprep.mubr.bf16.mxu0 0
    %524 = vmatmul.mubr.bf16.gmra.mxu0 %v330
    %v525 = vpop.f32.mrf.mxu0
    %v526 = vadd.f32 0.0, %v525
    %v527 = vpop.f32.mrf.mxu0
    %v528 = vadd.f32 0.0, %v527
    %v529 = vpop.f32.mrf.mxu0
    %v530 = vpop.f32.mrf.mxu0
    %531 = vdwg.mxu0
    %532 = vmatprep.subr.bf16.mxu0 %v458
    %533 = vmatpush1.bf16.msra.mxu0 %v457
    %534 = vmatprep.subr.bf16.mxu0 %v454
    %535 = vmatpush1.bf16.msra.mxu0 %v453
    %536 = vmatprep.subr.bf16.mxu0 %v450
    %537 = vmatpush1.bf16.msra.mxu0 %v449
    %538 = vmatprep.subr.bf16.mxu0 %v446
    %539 = vmatpush1.bf16.msra.mxu0 %v445
    %540 = vmatprep.subr.bf16.mxu0 %v442
    %541 = vmatpush1.bf16.msra.mxu0 %v441
    %542 = vmatprep.subr.bf16.mxu0 %v438
    %543 = vmatpush1.bf16.msra.mxu0 %v437
    %544 = vmatprep.subr.bf16.mxu0 %v434
    %545 = vmatpush1.bf16.msra.mxu0 %v433
    %546 = vmatprep.subr.bf16.mxu0 %v430
    %547 = vmatpush1.bf16.msra.mxu0 %v429
    %548 = vmatprep.subr.bf16.mxu0 0
    %549 = vmatpush2.bf16.msra.mxu0 0
    %550 = vmatprep.subr.bf16.mxu0 0
    %551 = vmatpush2.bf16.msra.mxu0 0
    %552 = vmatprep.subr.bf16.mxu0 0
    %553 = vmatpush2.bf16.msra.mxu0 0
    %554 = vmatprep.subr.bf16.mxu0 0
    %555 = vmatpush2.bf16.msra.mxu0 0
    %556 = vmatprep.subr.bf16.mxu0 0
    %557 = vmatpush2.bf16.msra.mxu0 0
    %558 = vmatprep.subr.bf16.mxu0 0
    %559 = vmatpush2.bf16.msra.mxu0 0
    %560 = vmatprep.subr.bf16.mxu0 0
    %561 = vmatpush2.bf16.msra.mxu0 0
    %562 = vmatprep.subr.bf16.mxu0 0
    %563 = vmatpush2.bf16.msra.mxu0 0
    %564 = vmatprep.mubr.bf16.mxu0 0
    %565 = vmatmul.mubr.bf16.gmra.mxu0 %v330
    %v566 = vpop.f32.mrf.mxu0
    %v567 = vadd.f32 0.0, %v566
    %v568 = vpop.f32.mrf.mxu0
    %v569 = vadd.f32 0.0, %v568
    %v570 = vpop.f32.mrf.mxu0
    %v571 = vpop.f32.mrf.mxu0
    %572 = vdwg.mxu0
    %v573 = vpack.c.bf16 %v526, %v526
    %v574 = vpack.c.bf16 %v528, %v528
    %v575 = vpack.c.bf16 %v567, %v567
    %v576 = vpack.c.bf16 %v569, %v569
    %577 = vmatprep.subr.mxu0 0.0
    %578 = vmatpush1.xpose.msra.mxu0 0.0
    %579 = vmatprep.subr.mxu0 0.0
    %580 = vmatpush1.xpose.msra.mxu0 0.0
    %581 = vmatprep.subr.mxu0 0.0
    %582 = vmatpush1.xpose.msra.mxu0 0.0
    %583 = vmatprep.subr.mxu0 0.0
    %584 = vmatpush1.xpose.msra.mxu0 0.0
    %585 = vmatprep.subr.mxu0 0.0
    %586 = vmatpush1.xpose.msra.mxu0 0.0
    %587 = vmatprep.subr.mxu0 0.0
    %588 = vmatpush1.xpose.msra.mxu0 0.0
    %589 = vmatprep.subr.mxu0 0.0
    %590 = vmatpush1.xpose.msra.mxu0 0.0
    %591 = vmatprep.subr.mxu0 0.0
    %592 = vmatpush1.xpose.msra.mxu0 0.0
    %593 = vmatprep.subr.mxu0 0.0
    %594 = vmatpush1.xpose.msra.mxu0 0.0
    %595 = vmatprep.subr.mxu0 0.0
    %596 = vmatpush1.xpose.msra.mxu0 0.0
    %597 = vmatprep.subr.mxu0 0.0
    %598 = vmatpush1.xpose.msra.mxu0 0.0
    %599 = vmatprep.subr.mxu0 0.0
    %600 = vmatpush1.xpose.msra.mxu0 0.0
    %601 = vmatprep.subr.mxu0 0.0
    %602 = vmatpush1.xpose.msra.mxu0 0.0
    %603 = vmatprep.subr.mxu0 0.0
    %604 = vmatpush1.xpose.msra.mxu0 0.0
    %605 = vmatprep.subr.mxu0 0.0
    %606 = vmatpush1.xpose.msra.mxu0 0.0
    %607 = vmatprep.subr.mxu0 %v323
    %608 = vmatpush1.xpose.msra.mxu0 %v322
    %609 = vmatprep.subr.mxu0 0.0
    %610 = vmatpush2.xpose.msra.mxu0 0.0
    %611 = vmatprep.subr.mxu0 0.0
    %612 = vmatpush2.xpose.msra.mxu0 0.0
    %613 = vmatprep.subr.mxu0 0.0
    %614 = vmatpush2.xpose.msra.mxu0 0.0
    %615 = vmatprep.subr.mxu0 0.0
    %616 = vmatpush2.xpose.msra.mxu0 0.0
    %617 = vmatprep.subr.mxu0 0.0
    %618 = vmatpush2.xpose.msra.mxu0 0.0
    %619 = vmatprep.subr.mxu0 0.0
    %620 = vmatpush2.xpose.msra.mxu0 0.0
    %621 = vmatprep.subr.mxu0 0.0
    %622 = vmatpush2.xpose.msra.mxu0 0.0
    %623 = vmatprep.subr.mxu0 0.0
    %624 = vmatpush2.xpose.msra.mxu0 0.0
    %625 = vmatprep.subr.mxu0 0.0
    %626 = vmatpush2.xpose.msra.mxu0 0.0
    %627 = vmatprep.subr.mxu0 0.0
    %628 = vmatpush2.xpose.msra.mxu0 0.0
    %629 = vmatprep.subr.mxu0 0.0
    %630 = vmatpush2.xpose.msra.mxu0 0.0
    %631 = vmatprep.subr.mxu0 0.0
    %632 = vmatpush2.xpose.msra.mxu0 0.0
    %633 = vmatprep.subr.mxu0 0.0
    %634 = vmatpush2.xpose.msra.mxu0 0.0
    %635 = vmatprep.subr.mxu0 0.0
    %636 = vmatpush2.xpose.msra.mxu0 0.0
    %637 = vmatprep.subr.mxu0 0.0
    %638 = vmatpush2.xpose.msra.mxu0 0.0
    %639 = vmatprep.subr.mxu0 0.0
    %640 = vmatpush2.xpose.msra.mxu0 0.0
    %641 = vmatprep.mubr.f32.mxu0 %v528
    %642 = vmatmul.mubr.f32.gmra.mxu0 %v526
    %v643 = vpop.f32.mrf.mxu0
    %v644 = vadd.f32 0.0, %v643
    %v645 = vpop.f32.mrf.mxu0
    %646 = vdwg.mxu0
    %647 = vmatprep.subr.mxu0 0.0
    %648 = vmatpush1.xpose.msra.mxu0 0.0
    %649 = vmatprep.subr.mxu0 0.0
    %650 = vmatpush1.xpose.msra.mxu0 0.0
    %651 = vmatprep.subr.mxu0 0.0
    %652 = vmatpush1.xpose.msra.mxu0 0.0
    %653 = vmatprep.subr.mxu0 0.0
    %654 = vmatpush1.xpose.msra.mxu0 0.0
    %655 = vmatprep.subr.mxu0 0.0
    %656 = vmatpush1.xpose.msra.mxu0 0.0
    %657 = vmatprep.subr.mxu0 0.0
    %658 = vmatpush1.xpose.msra.mxu0 0.0
    %659 = vmatprep.subr.mxu0 0.0
    %660 = vmatpush1.xpose.msra.mxu0 0.0
    %661 = vmatprep.subr.mxu0 0.0
    %662 = vmatpush1.xpose.msra.mxu0 0.0
    %663 = vmatprep.subr.mxu0 0.0
    %664 = vmatpush1.xpose.msra.mxu0 0.0
    %665 = vmatprep.subr.mxu0 0.0
    %666 = vmatpush1.xpose.msra.mxu0 0.0
    %667 = vmatprep.subr.mxu0 0.0
    %668 = vmatpush1.xpose.msra.mxu0 0.0
    %669 = vmatprep.subr.mxu0 0.0
    %670 = vmatpush1.xpose.msra.mxu0 0.0
    %671 = vmatprep.subr.mxu0 0.0
    %672 = vmatpush1.xpose.msra.mxu0 0.0
    %673 = vmatprep.subr.mxu0 0.0
    %674 = vmatpush1.xpose.msra.mxu0 0.0
    %675 = vmatprep.subr.mxu0 0.0
    %676 = vmatpush1.xpose.msra.mxu0 0.0
    %677 = vmatprep.subr.mxu0 %v325
    %678 = vmatpush1.xpose.msra.mxu0 %v324
    %679 = vmatprep.subr.mxu0 0.0
    %680 = vmatpush2.xpose.msra.mxu0 0.0
    %681 = vmatprep.subr.mxu0 0.0
    %682 = vmatpush2.xpose.msra.mxu0 0.0
    %683 = vmatprep.subr.mxu0 0.0
    %684 = vmatpush2.xpose.msra.mxu0 0.0
    %685 = vmatprep.subr.mxu0 0.0
    %686 = vmatpush2.xpose.msra.mxu0 0.0
    %687 = vmatprep.subr.mxu0 0.0
    %688 = vmatpush2.xpose.msra.mxu0 0.0
    %689 = vmatprep.subr.mxu0 0.0
    %690 = vmatpush2.xpose.msra.mxu0 0.0
    %691 = vmatprep.subr.mxu0 0.0
    %692 = vmatpush2.xpose.msra.mxu0 0.0
    %693 = vmatprep.subr.mxu0 0.0
    %694 = vmatpush2.xpose.msra.mxu0 0.0
    %695 = vmatprep.subr.mxu0 0.0
    %696 = vmatpush2.xpose.msra.mxu0 0.0
    %697 = vmatprep.subr.mxu0 0.0
    %698 = vmatpush2.xpose.msra.mxu0 0.0
    %699 = vmatprep.subr.mxu0 0.0
    %700 = vmatpush2.xpose.msra.mxu0 0.0
    %701 = vmatprep.subr.mxu0 0.0
    %702 = vmatpush2.xpose.msra.mxu0 0.0
    %703 = vmatprep.subr.mxu0 0.0
    %704 = vmatpush2.xpose.msra.mxu0 0.0
    %705 = vmatprep.subr.mxu0 0.0
    %706 = vmatpush2.xpose.msra.mxu0 0.0
    %707 = vmatprep.subr.mxu0 0.0
    %708 = vmatpush2.xpose.msra.mxu0 0.0
    %709 = vmatprep.subr.mxu0 0.0
    %710 = vmatpush2.xpose.msra.mxu0 0.0
    %711 = vmatprep.mubr.f32.mxu0 %v569
    %712 = vmatmul.mubr.f32.gmra.mxu0 %v567
    %v713 = vpop.f32.mrf.mxu0
    %v714 = vadd.f32 %v644, %v713
    %v715 = vpop.f32.mrf.mxu0
    %716 = vdwg.mxu0
    %717 = vmatprep.subr.mxu0 0.0
    %718 = vmatpush1.xpose.msra.mxu0 0.0
    %719 = vmatprep.subr.mxu0 0.0
    %720 = vmatpush1.xpose.msra.mxu0 0.0
    %721 = vmatprep.subr.mxu0 0.0
    %722 = vmatpush1.xpose.msra.mxu0 0.0
    %723 = vmatprep.subr.mxu0 0.0
    %724 = vmatpush1.xpose.msra.mxu0 0.0
    %725 = vmatprep.subr.mxu0 0.0
    %726 = vmatpush1.xpose.msra.mxu0 0.0
    %727 = vmatprep.subr.mxu0 0.0
    %728 = vmatpush1.xpose.msra.mxu0 0.0
    %729 = vmatprep.subr.mxu0 0.0
    %730 = vmatpush1.xpose.msra.mxu0 0.0
    %731 = vmatprep.subr.mxu0 0.0
    %732 = vmatpush1.xpose.msra.mxu0 0.0
    %733 = vmatprep.subr.mxu0 0.0
    %734 = vmatpush1.xpose.msra.mxu0 0.0
    %735 = vmatprep.subr.mxu0 0.0
    %736 = vmatpush1.xpose.msra.mxu0 0.0
    %737 = vmatprep.subr.mxu0 0.0
    %738 = vmatpush1.xpose.msra.mxu0 0.0
    %739 = vmatprep.subr.mxu0 0.0
    %740 = vmatpush1.xpose.msra.mxu0 0.0
    %741 = vmatprep.subr.mxu0 0.0
    %742 = vmatpush1.xpose.msra.mxu0 0.0
    %743 = vmatprep.subr.mxu0 0.0
    %744 = vmatpush1.xpose.msra.mxu0 0.0
    %745 = vmatprep.subr.mxu0 0.0
    %746 = vmatpush1.xpose.msra.mxu0 0.0
    %747 = vmatprep.subr.mxu0 %v528
    %748 = vmatpush1.xpose.msra.mxu0 %v526
    %749 = vmatprep.subr.mxu0 0.0
    %750 = vmatpush2.xpose.msra.mxu0 0.0
    %751 = vmatprep.subr.mxu0 0.0
    %752 = vmatpush2.xpose.msra.mxu0 0.0
    %753 = vmatprep.subr.mxu0 0.0
    %754 = vmatpush2.xpose.msra.mxu0 0.0
    %755 = vmatprep.subr.mxu0 0.0
    %756 = vmatpush2.xpose.msra.mxu0 0.0
    %757 = vmatprep.subr.mxu0 0.0
    %758 = vmatpush2.xpose.msra.mxu0 0.0
    %759 = vmatprep.subr.mxu0 0.0
    %760 = vmatpush2.xpose.msra.mxu0 0.0
    %761 = vmatprep.subr.mxu0 0.0
    %762 = vmatpush2.xpose.msra.mxu0 0.0
    %763 = vmatprep.subr.mxu0 0.0
    %764 = vmatpush2.xpose.msra.mxu0 0.0
    %765 = vmatprep.subr.mxu0 0.0
    %766 = vmatpush2.xpose.msra.mxu0 0.0
    %767 = vmatprep.subr.mxu0 0.0
    %768 = vmatpush2.xpose.msra.mxu0 0.0
    %769 = vmatprep.subr.mxu0 0.0
    %770 = vmatpush2.xpose.msra.mxu0 0.0
    %771 = vmatprep.subr.mxu0 0.0
    %772 = vmatpush2.xpose.msra.mxu0 0.0
    %773 = vmatprep.subr.mxu0 0.0
    %774 = vmatpush2.xpose.msra.mxu0 0.0
    %775 = vmatprep.subr.mxu0 0.0
    %776 = vmatpush2.xpose.msra.mxu0 0.0
    %777 = vmatprep.subr.mxu0 0.0
    %778 = vmatpush2.xpose.msra.mxu0 0.0
    %779 = vmatprep.subr.mxu0 0.0
    %780 = vmatpush2.xpose.msra.mxu0 0.0
    %781 = vmatprep.mubr.f32.mxu0 %v327
    %782 = vmatmul.mubr.f32.gmra.mxu0 %v326
    %v783 = vpop.f32.mrf.mxu0
    %v784 = vadd.f32 0.0, %v783
    %v785 = vpop.f32.mrf.mxu0
    %786 = vdwg.mxu0
    %787 = vmatprep.subr.mxu0 0.0
    %788 = vmatpush1.xpose.msra.mxu0 0.0
    %789 = vmatprep.subr.mxu0 0.0
    %790 = vmatpush1.xpose.msra.mxu0 0.0
    %791 = vmatprep.subr.mxu0 0.0
    %792 = vmatpush1.xpose.msra.mxu0 0.0
    %793 = vmatprep.subr.mxu0 0.0
    %794 = vmatpush1.xpose.msra.mxu0 0.0
    %795 = vmatprep.subr.mxu0 0.0
    %796 = vmatpush1.xpose.msra.mxu0 0.0
    %797 = vmatprep.subr.mxu0 0.0
    %798 = vmatpush1.xpose.msra.mxu0 0.0
    %799 = vmatprep.subr.mxu0 0.0
    %800 = vmatpush1.xpose.msra.mxu0 0.0
    %801 = vmatprep.subr.mxu0 0.0
    %802 = vmatpush1.xpose.msra.mxu0 0.0
    %803 = vmatprep.subr.mxu0 0.0
    %804 = vmatpush1.xpose.msra.mxu0 0.0
    %805 = vmatprep.subr.mxu0 0.0
    %806 = vmatpush1.xpose.msra.mxu0 0.0
    %807 = vmatprep.subr.mxu0 0.0
    %808 = vmatpush1.xpose.msra.mxu0 0.0
    %809 = vmatprep.subr.mxu0 0.0
    %810 = vmatpush1.xpose.msra.mxu0 0.0
    %811 = vmatprep.subr.mxu0 0.0
    %812 = vmatpush1.xpose.msra.mxu0 0.0
    %813 = vmatprep.subr.mxu0 0.0
    %814 = vmatpush1.xpose.msra.mxu0 0.0
    %815 = vmatprep.subr.mxu0 0.0
    %816 = vmatpush1.xpose.msra.mxu0 0.0
    %817 = vmatprep.subr.mxu0 %v569
    %818 = vmatpush1.xpose.msra.mxu0 %v567
    %819 = vmatprep.subr.mxu0 0.0
    %820 = vmatpush2.xpose.msra.mxu0 0.0
    %821 = vmatprep.subr.mxu0 0.0
    %822 = vmatpush2.xpose.msra.mxu0 0.0
    %823 = vmatprep.subr.mxu0 0.0
    %824 = vmatpush2.xpose.msra.mxu0 0.0
    %825 = vmatprep.subr.mxu0 0.0
    %826 = vmatpush2.xpose.msra.mxu0 0.0
    %827 = vmatprep.subr.mxu0 0.0
    %828 = vmatpush2.xpose.msra.mxu0 0.0
    %829 = vmatprep.subr.mxu0 0.0
    %830 = vmatpush2.xpose.msra.mxu0 0.0
    %831 = vmatprep.subr.mxu0 0.0
    %832 = vmatpush2.xpose.msra.mxu0 0.0
    %833 = vmatprep.subr.mxu0 0.0
    %834 = vmatpush2.xpose.msra.mxu0 0.0
    %835 = vmatprep.subr.mxu0 0.0
    %836 = vmatpush2.xpose.msra.mxu0 0.0
    %837 = vmatprep.subr.mxu0 0.0
    %838 = vmatpush2.xpose.msra.mxu0 0.0
    %839 = vmatprep.subr.mxu0 0.0
    %840 = vmatpush2.xpose.msra.mxu0 0.0
    %841 = vmatprep.subr.mxu0 0.0
    %842 = vmatpush2.xpose.msra.mxu0 0.0
    %843 = vmatprep.subr.mxu0 0.0
    %844 = vmatpush2.xpose.msra.mxu0 0.0
    %845 = vmatprep.subr.mxu0 0.0
    %846 = vmatpush2.xpose.msra.mxu0 0.0
    %847 = vmatprep.subr.mxu0 0.0
    %848 = vmatpush2.xpose.msra.mxu0 0.0
    %849 = vmatprep.subr.mxu0 0.0
    %850 = vmatpush2.xpose.msra.mxu0 0.0
    %851 = vmatprep.mubr.f32.mxu0 %v329
    %852 = vmatmul.mubr.f32.gmra.mxu0 %v328
    %v853 = vpop.f32.mrf.mxu0
    %v854 = vadd.f32 %v784, %v853
    %v855 = vpop.f32.mrf.mxu0
    %856 = vdwg.mxu0
    %v857 = vpack.c.bf16 %v854, %v854
    %vm858 = vcmask 64512
    %v860 = vsel %vm858, %v857, 0
    %vm862 = vcmask 1043456
    %v864 = vsel %vm862, %v135, 0
    %866 = vmatprep.subr.bf16.mxu0 0
    %867 = vmatpush1.bf16.msra.mxu0 0
    %868 = vmatprep.subr.bf16.mxu0 0
    %869 = vmatpush1.bf16.msra.mxu0 0
    %870 = vmatprep.subr.bf16.mxu0 0
    %871 = vmatpush1.bf16.msra.mxu0 0
    %872 = vmatprep.subr.bf16.mxu0 0
    %873 = vmatpush1.bf16.msra.mxu0 0
    %874 = vmatprep.subr.bf16.mxu0 0
    %875 = vmatpush1.bf16.msra.mxu0 0
    %876 = vmatprep.subr.bf16.mxu0 0
    %877 = vmatpush1.bf16.msra.mxu0 0
    %878 = vmatprep.subr.bf16.mxu0 0
    %879 = vmatpush1.bf16.msra.mxu0 0
    %880 = vmatprep.subr.bf16.mxu0 0
    %881 = vmatpush1.bf16.msra.mxu0 %v864
    %882 = vmatprep.subr.bf16.mxu0 0
    %883 = vmatpush2.bf16.msra.mxu0 0
    %884 = vmatprep.subr.bf16.mxu0 0
    %885 = vmatpush2.bf16.msra.mxu0 0
    %886 = vmatprep.subr.bf16.mxu0 0
    %887 = vmatpush2.bf16.msra.mxu0 0
    %888 = vmatprep.subr.bf16.mxu0 0
    %889 = vmatpush2.bf16.msra.mxu0 0
    %890 = vmatprep.subr.bf16.mxu0 0
    %891 = vmatpush2.bf16.msra.mxu0 0
    %892 = vmatprep.subr.bf16.mxu0 0
    %893 = vmatpush2.bf16.msra.mxu0 0
    %894 = vmatprep.subr.bf16.mxu0 0
    %895 = vmatpush2.bf16.msra.mxu0 0
    %896 = vmatprep.subr.bf16.mxu0 0
    %897 = vmatpush2.bf16.msra.mxu0 0
    %898 = vmatprep.mubr.bf16.mxu0 0
    %899 = vmatmul.mubr.bf16.gmra.mxu0 %v860
    %v900 = vpop.f32.mrf.mxu0
    %v901 = vadd.f32 0.0, %v900
    %v902 = vpop.f32.mrf.mxu0
    %v903 = vpop.f32.mrf.mxu0
    %v904 = vpop.f32.mrf.mxu0
    %905 = vdwg.mxu0
    %v906 = vmul.f32 %v139, 0.25
    %908 = vset.pattern.permute.xlu0 0
    %909 = vperm.xlu0 %908, %v714
    %v910 = vpop.permute.xlu0 %909
    %v912 = vlaneseq
    %v913 = vshrl.u32 %v912, 7
    %v914 = vsub.s32 0, %v913
    %v915 = vrot.slane %v901, %v914
    %v916 = vadd.f32 %v910, %v915
    %vm917 = vcmp.ge.f32.partialorder %v916, 0.0
    %v918 = vmul.f32 %v916, 0.2
    %v919 = vsel %vm917, %v916, %v918
    %v920 = vadd.f32 %v919, %v138
    %921 = vmax.xlane.f32.xlu0 %v920
    %v922 = vpop.xlane.xlu0 %921
    %v923 = vsub.f32 %v920, %v922
    %v924 = vmul.f32 %v923, 1.442695
    %v925 = vpow.pop %v924
    %v926 = vmul.f32 %v925, %v136
    %927 = vadd.xlane.f32.xlu0 %v926
    %v928 = vpop.xlane.xlu0 %927
    %v929 = vmax.f32 %v928, 1e-30
    %v930 = vrcp.pop %v929
    %v931 = vmul.f32 %v926, %v930
    %v932 = vpack.c.bf16 %v931, %v931
    %933 = vxpose.xlu0.c.b16.start [1/8] %v932, 128
    %934 = vxpose.xlu0.c.b16.cont [2/8] 0, 128
    %935 = vxpose.xlu0.c.b16.cont [3/8] 0, 128
    %936 = vxpose.xlu0.c.b16.cont [4/8] 0, 128
    %937 = vxpose.xlu0.c.b16.cont [5/8] 0, 128
    %938 = vxpose.xlu0.c.b16.cont [6/8] 0, 128
    %939 = vxpose.xlu0.c.b16.cont [7/8] 0, 128
    %940 = vxpose.xlu0.c.b16.end [8/8] 0, 128
    %v941 = vpop.trf.xlu0
    %v942 = vpop.trf.xlu0
    %v943 = vpop.trf.xlu0
    %v944 = vpop.trf.xlu0
    %v945 = vpop.trf.xlu0
    %v946 = vpop.trf.xlu0
    %v947 = vpop.trf.xlu0
    %v948 = vpop.trf.xlu0
    %v950 = vsel %vm858, %v941, 0
    %v953 = vsel %vm858, %v942, 0
    %v956 = vsel %vm858, %v943, 0
    %v959 = vsel %vm858, %v944, 0
    %v962 = vsel %vm858, %v945, 0
    %v965 = vsel %vm858, %v946, 0
    %v968 = vsel %vm858, %v947, 0
    %v971 = vsel %vm858, %v948, 0
    %v974 = vsel %vm862, %v573, 0
    %976 = vmatprep.subr.bf16.mxu0 0
    %977 = vmatpush1.bf16.msra.mxu0 0
    %978 = vmatprep.subr.bf16.mxu0 0
    %979 = vmatpush1.bf16.msra.mxu0 0
    %980 = vmatprep.subr.bf16.mxu0 0
    %981 = vmatpush1.bf16.msra.mxu0 0
    %982 = vmatprep.subr.bf16.mxu0 0
    %983 = vmatpush1.bf16.msra.mxu0 0
    %984 = vmatprep.subr.bf16.mxu0 0
    %985 = vmatpush1.bf16.msra.mxu0 0
    %986 = vmatprep.subr.bf16.mxu0 0
    %987 = vmatpush1.bf16.msra.mxu0 0
    %988 = vmatprep.subr.bf16.mxu0 0
    %989 = vmatpush1.bf16.msra.mxu0 0
    %990 = vmatprep.subr.bf16.mxu0 0
    %991 = vmatpush1.bf16.msra.mxu0 %v974
    %992 = vmatprep.subr.bf16.mxu0 0
    %993 = vmatpush2.bf16.msra.mxu0 0
    %994 = vmatprep.subr.bf16.mxu0 0
    %995 = vmatpush2.bf16.msra.mxu0 0
    %996 = vmatprep.subr.bf16.mxu0 0
    %997 = vmatpush2.bf16.msra.mxu0 0
    %998 = vmatprep.subr.bf16.mxu0 0
    %999 = vmatpush2.bf16.msra.mxu0 0
    %1000 = vmatprep.subr.bf16.mxu0 0
    %1001 = vmatpush2.bf16.msra.mxu0 0
    %1002 = vmatprep.subr.bf16.mxu0 0
    %1003 = vmatpush2.bf16.msra.mxu0 0
    %1004 = vmatprep.subr.bf16.mxu0 0
    %1005 = vmatpush2.bf16.msra.mxu0 0
    %1006 = vmatprep.subr.bf16.mxu0 0
    %1007 = vmatpush2.bf16.msra.mxu0 0
    %1008 = vmatprep.mubr.bf16.mxu0 0
    %1009 = vmatmul.mubr.bf16.gmra.mxu0 %v950
    %v1010 = vpop.f32.mrf.mxu0
    %v1011 = vadd.f32 0.0, %v1010
    %v1012 = vpop.f32.mrf.mxu0
    %v1013 = vpop.f32.mrf.mxu0
    %v1014 = vadd.f32 0.0, %v1013
    %v1015 = vpop.f32.mrf.mxu0
    %1016 = vmatprep.mubr.bf16.mxu0 0
    %1017 = vmatmul.mubr.bf16.gmra.mxu0 %v953
    %v1018 = vpop.f32.mrf.mxu0
    %v1019 = vadd.f32 0.0, %v1018
    %v1020 = vpop.f32.mrf.mxu0
    %v1021 = vpop.f32.mrf.mxu0
    %v1022 = vadd.f32 0.0, %v1021
    %v1023 = vpop.f32.mrf.mxu0
    %1024 = vmatprep.mubr.bf16.mxu0 0
    %1025 = vmatmul.mubr.bf16.gmra.mxu0 %v956
    %v1026 = vpop.f32.mrf.mxu0
    %v1027 = vadd.f32 0.0, %v1026
    %v1028 = vpop.f32.mrf.mxu0
    %v1029 = vpop.f32.mrf.mxu0
    %v1030 = vadd.f32 0.0, %v1029
    %v1031 = vpop.f32.mrf.mxu0
    %1032 = vmatprep.mubr.bf16.mxu0 0
    %1033 = vmatmul.mubr.bf16.gmra.mxu0 %v959
    %v1034 = vpop.f32.mrf.mxu0
    %v1035 = vadd.f32 0.0, %v1034
    %v1036 = vpop.f32.mrf.mxu0
    %v1037 = vpop.f32.mrf.mxu0
    %v1038 = vadd.f32 0.0, %v1037
    %v1039 = vpop.f32.mrf.mxu0
    %1040 = vmatprep.mubr.bf16.mxu0 0
    %1041 = vmatmul.mubr.bf16.gmra.mxu0 %v962
    %v1042 = vpop.f32.mrf.mxu0
    %v1043 = vadd.f32 0.0, %v1042
    %v1044 = vpop.f32.mrf.mxu0
    %v1045 = vpop.f32.mrf.mxu0
    %v1046 = vadd.f32 0.0, %v1045
    %v1047 = vpop.f32.mrf.mxu0
    %1048 = vmatprep.mubr.bf16.mxu0 0
    %1049 = vmatmul.mubr.bf16.gmra.mxu0 %v965
    %v1050 = vpop.f32.mrf.mxu0
    %v1051 = vadd.f32 0.0, %v1050
    %v1052 = vpop.f32.mrf.mxu0
    %v1053 = vpop.f32.mrf.mxu0
    %v1054 = vadd.f32 0.0, %v1053
    %v1055 = vpop.f32.mrf.mxu0
    %1056 = vmatprep.mubr.bf16.mxu0 0
    %1057 = vmatmul.mubr.bf16.gmra.mxu0 %v968
    %v1058 = vpop.f32.mrf.mxu0
    %v1059 = vadd.f32 0.0, %v1058
    %v1060 = vpop.f32.mrf.mxu0
    %v1061 = vpop.f32.mrf.mxu0
    %v1062 = vadd.f32 0.0, %v1061
    %v1063 = vpop.f32.mrf.mxu0
    %1064 = vmatprep.mubr.bf16.mxu0 0
    %1065 = vmatmul.mubr.bf16.gmra.mxu0 %v971
    %v1066 = vpop.f32.mrf.mxu0
    %v1067 = vadd.f32 0.0, %v1066
    %v1068 = vpop.f32.mrf.mxu0
    %v1069 = vpop.f32.mrf.mxu0
    %v1070 = vadd.f32 0.0, %v1069
    %v1071 = vpop.f32.mrf.mxu0
    %1072 = vdwg.mxu0
    %1074 = vset.pattern.permute.xlu0 0
    %1075 = vperm.xlu0 %1074, %v140
    %v1076 = vpop.permute.xlu0 %1075
    %1079 = vset.pattern.permute.xlu0 0
    %1080 = vperm.xlu0 %1079, %v141
    %v1081 = vpop.permute.xlu0 %1080
    %1084 = vset.pattern.permute.xlu0 0
    %1085 = vperm.xlu0 %1084, %v142
    %v1086 = vpop.permute.xlu0 %1085
    %1089 = vset.pattern.permute.xlu0 0
    %1090 = vperm.xlu0 %1089, %v143
    %v1091 = vpop.permute.xlu0 %1090
    %1094 = vset.pattern.permute.xlu0 0
    %1095 = vperm.xlu0 %1094, %v144
    %v1096 = vpop.permute.xlu0 %1095
    %1099 = vset.pattern.permute.xlu0 0
    %1100 = vperm.xlu0 %1099, %v145
    %v1101 = vpop.permute.xlu0 %1100
    %1104 = vset.pattern.permute.xlu0 0
    %1105 = vperm.xlu0 %1104, %v146
    %v1106 = vpop.permute.xlu0 %1105
    %1109 = vset.pattern.permute.xlu0 0
    %1110 = vperm.xlu0 %1109, %v147
    %v1111 = vpop.permute.xlu0 %1110
    %1114 = vset.pattern.permute.xlu0 0
    %1115 = vperm.xlu0 %1114, %v148
    %v1116 = vpop.permute.xlu0 %1115
    %1119 = vset.pattern.permute.xlu0 0
    %1120 = vperm.xlu0 %1119, %v149
    %v1121 = vpop.permute.xlu0 %1120
    %1124 = vset.pattern.permute.xlu0 0
    %1125 = vperm.xlu0 %1124, %v150
    %v1126 = vpop.permute.xlu0 %1125
    %1129 = vset.pattern.permute.xlu0 0
    %1130 = vperm.xlu0 %1129, %v151
    %v1131 = vpop.permute.xlu0 %1130
    %1134 = vset.pattern.permute.xlu0 0
    %1135 = vperm.xlu0 %1134, %v152
    %v1136 = vpop.permute.xlu0 %1135
    %1139 = vset.pattern.permute.xlu0 0
    %1140 = vperm.xlu0 %1139, %v153
    %v1141 = vpop.permute.xlu0 %1140
    %1144 = vset.pattern.permute.xlu0 0
    %1145 = vperm.xlu0 %1144, %v154
    %v1146 = vpop.permute.xlu0 %1145
    %1149 = vset.pattern.permute.xlu0 0
    %1150 = vperm.xlu0 %1149, %v155
    %v1151 = vpop.permute.xlu0 %1150
    %v1153 = vmul.f32 %v1011, %v1076
    %v1154 = vmul.f32 %v1014, %v1081
    %v1155 = vmul.f32 %v1019, %v1086
    %v1156 = vmul.f32 %v1022, %v1091
    %v1157 = vmul.f32 %v1027, %v1096
    %v1158 = vmul.f32 %v1030, %v1101
    %v1159 = vmul.f32 %v1035, %v1106
    %v1160 = vmul.f32 %v1038, %v1111
    %v1161 = vmul.f32 %v1043, %v1116
    %v1162 = vmul.f32 %v1046, %v1121
    %v1163 = vmul.f32 %v1051, %v1126
    %v1164 = vmul.f32 %v1054, %v1131
    %v1165 = vmul.f32 %v1059, %v1136
    %v1166 = vmul.f32 %v1062, %v1141
    %v1167 = vmul.f32 %v1067, %v1146
    %v1168 = vmul.f32 %v1070, %v1151
    %v1169 = vpack.c.bf16 %v1154, %v1153
    %v1170 = vpack.c.bf16 %v1156, %v1155
    %v1171 = vpack.c.bf16 %v1158, %v1157
    %v1172 = vpack.c.bf16 %v1160, %v1159
    %v1173 = vpack.c.bf16 %v1162, %v1161
    %v1174 = vpack.c.bf16 %v1164, %v1163
    %v1175 = vpack.c.bf16 %v1166, %v1165
    %v1176 = vpack.c.bf16 %v1168, %v1167
    %1177 = vset.pattern.permute.xlu0 1
    %1178 = vperm.xlu0 %1177, %v714
    %v1179 = vpop.permute.xlu0 %1178
    %v1181 = vlaneseq
    %v1182 = vshrl.u32 %v1181, 7
    %v1183 = vsub.s32 1, %v1182
    %v1184 = vrot.slane %v901, %v1183
    %v1185 = vadd.f32 %v1179, %v1184
    %vm1186 = vcmp.ge.f32.partialorder %v1185, 0.0
    %v1187 = vmul.f32 %v1185, 0.2
    %v1188 = vsel %vm1186, %v1185, %v1187
    %v1189 = vadd.f32 %v1188, %v138
    %1190 = vmax.xlane.f32.xlu0 %v1189
    %v1191 = vpop.xlane.xlu0 %1190
    %v1192 = vsub.f32 %v1189, %v1191
    %v1193 = vmul.f32 %v1192, 1.442695
    %v1194 = vpow.pop %v1193
    %v1195 = vmul.f32 %v1194, %v136
    %1196 = vadd.xlane.f32.xlu0 %v1195
    %v1197 = vpop.xlane.xlu0 %1196
    %v1198 = vmax.f32 %v1197, 1e-30
    %v1199 = vrcp.pop %v1198
    %v1200 = vmul.f32 %v1195, %v1199
    %v1201 = vpack.c.bf16 %v1200, %v1200
    %1202 = vxpose.xlu0.c.b16.start [1/8] %v1201, 128
    %1203 = vxpose.xlu0.c.b16.cont [2/8] 0, 128
    %1204 = vxpose.xlu0.c.b16.cont [3/8] 0, 128
    %1205 = vxpose.xlu0.c.b16.cont [4/8] 0, 128
    %1206 = vxpose.xlu0.c.b16.cont [5/8] 0, 128
    %1207 = vxpose.xlu0.c.b16.cont [6/8] 0, 128
    %1208 = vxpose.xlu0.c.b16.cont [7/8] 0, 128
    %1209 = vxpose.xlu0.c.b16.end [8/8] 0, 128
    %v1210 = vpop.trf.xlu0
    %v1211 = vpop.trf.xlu0
    %v1212 = vpop.trf.xlu0
    %v1213 = vpop.trf.xlu0
    %v1214 = vpop.trf.xlu0
    %v1215 = vpop.trf.xlu0
    %v1216 = vpop.trf.xlu0
    %v1217 = vpop.trf.xlu0
    %v1219 = vsel %vm858, %v1210, 0
    %v1222 = vsel %vm858, %v1211, 0
    %v1225 = vsel %vm858, %v1212, 0
    %v1228 = vsel %vm858, %v1213, 0
    %v1231 = vsel %vm858, %v1214, 0
    %v1234 = vsel %vm858, %v1215, 0
    %v1237 = vsel %vm858, %v1216, 0
    %v1240 = vsel %vm858, %v1217, 0
    %v1243 = vsel %vm862, %v574, 0
    %1245 = vmatprep.subr.bf16.mxu0 0
    %1246 = vmatpush1.bf16.msra.mxu0 0
    %1247 = vmatprep.subr.bf16.mxu0 0
    %1248 = vmatpush1.bf16.msra.mxu0 0
    %1249 = vmatprep.subr.bf16.mxu0 0
    %1250 = vmatpush1.bf16.msra.mxu0 0
    %1251 = vmatprep.subr.bf16.mxu0 0
    %1252 = vmatpush1.bf16.msra.mxu0 0
    %1253 = vmatprep.subr.bf16.mxu0 0
    %1254 = vmatpush1.bf16.msra.mxu0 0
    %1255 = vmatprep.subr.bf16.mxu0 0
    %1256 = vmatpush1.bf16.msra.mxu0 0
    %1257 = vmatprep.subr.bf16.mxu0 0
    %1258 = vmatpush1.bf16.msra.mxu0 0
    %1259 = vmatprep.subr.bf16.mxu0 0
    %1260 = vmatpush1.bf16.msra.mxu0 %v1243
    %1261 = vmatprep.subr.bf16.mxu0 0
    %1262 = vmatpush2.bf16.msra.mxu0 0
    %1263 = vmatprep.subr.bf16.mxu0 0
    %1264 = vmatpush2.bf16.msra.mxu0 0
    %1265 = vmatprep.subr.bf16.mxu0 0
    %1266 = vmatpush2.bf16.msra.mxu0 0
    %1267 = vmatprep.subr.bf16.mxu0 0
    %1268 = vmatpush2.bf16.msra.mxu0 0
    %1269 = vmatprep.subr.bf16.mxu0 0
    %1270 = vmatpush2.bf16.msra.mxu0 0
    %1271 = vmatprep.subr.bf16.mxu0 0
    %1272 = vmatpush2.bf16.msra.mxu0 0
    %1273 = vmatprep.subr.bf16.mxu0 0
    %1274 = vmatpush2.bf16.msra.mxu0 0
    %1275 = vmatprep.subr.bf16.mxu0 0
    %1276 = vmatpush2.bf16.msra.mxu0 0
    %1277 = vmatprep.mubr.bf16.mxu0 0
    %1278 = vmatmul.mubr.bf16.gmra.mxu0 %v1219
    %v1279 = vpop.f32.mrf.mxu0
    %v1280 = vadd.f32 0.0, %v1279
    %v1281 = vpop.f32.mrf.mxu0
    %v1282 = vpop.f32.mrf.mxu0
    %v1283 = vadd.f32 0.0, %v1282
    %v1284 = vpop.f32.mrf.mxu0
    %1285 = vmatprep.mubr.bf16.mxu0 0
    %1286 = vmatmul.mubr.bf16.gmra.mxu0 %v1222
    %v1287 = vpop.f32.mrf.mxu0
    %v1288 = vadd.f32 0.0, %v1287
    %v1289 = vpop.f32.mrf.mxu0
    %v1290 = vpop.f32.mrf.mxu0
    %v1291 = vadd.f32 0.0, %v1290
    %v1292 = vpop.f32.mrf.mxu0
    %1293 = vmatprep.mubr.bf16.mxu0 0
    %1294 = vmatmul.mubr.bf16.gmra.mxu0 %v1225
    %v1295 = vpop.f32.mrf.mxu0
    %v1296 = vadd.f32 0.0, %v1295
    %v1297 = vpop.f32.mrf.mxu0
    %v1298 = vpop.f32.mrf.mxu0
    %v1299 = vadd.f32 0.0, %v1298
    %v1300 = vpop.f32.mrf.mxu0
    %1301 = vmatprep.mubr.bf16.mxu0 0
    %1302 = vmatmul.mubr.bf16.gmra.mxu0 %v1228
    %v1303 = vpop.f32.mrf.mxu0
    %v1304 = vadd.f32 0.0, %v1303
    %v1305 = vpop.f32.mrf.mxu0
    %v1306 = vpop.f32.mrf.mxu0
    %v1307 = vadd.f32 0.0, %v1306
    %v1308 = vpop.f32.mrf.mxu0
    %1309 = vmatprep.mubr.bf16.mxu0 0
    %1310 = vmatmul.mubr.bf16.gmra.mxu0 %v1231
    %v1311 = vpop.f32.mrf.mxu0
    %v1312 = vadd.f32 0.0, %v1311
    %v1313 = vpop.f32.mrf.mxu0
    %v1314 = vpop.f32.mrf.mxu0
    %v1315 = vadd.f32 0.0, %v1314
    %v1316 = vpop.f32.mrf.mxu0
    %1317 = vmatprep.mubr.bf16.mxu0 0
    %1318 = vmatmul.mubr.bf16.gmra.mxu0 %v1234
    %v1319 = vpop.f32.mrf.mxu0
    %v1320 = vadd.f32 0.0, %v1319
    %v1321 = vpop.f32.mrf.mxu0
    %v1322 = vpop.f32.mrf.mxu0
    %v1323 = vadd.f32 0.0, %v1322
    %v1324 = vpop.f32.mrf.mxu0
    %1325 = vmatprep.mubr.bf16.mxu0 0
    %1326 = vmatmul.mubr.bf16.gmra.mxu0 %v1237
    %v1327 = vpop.f32.mrf.mxu0
    %v1328 = vadd.f32 0.0, %v1327
    %v1329 = vpop.f32.mrf.mxu0
    %v1330 = vpop.f32.mrf.mxu0
    %v1331 = vadd.f32 0.0, %v1330
    %v1332 = vpop.f32.mrf.mxu0
    %1333 = vmatprep.mubr.bf16.mxu0 0
    %1334 = vmatmul.mubr.bf16.gmra.mxu0 %v1240
    %v1335 = vpop.f32.mrf.mxu0
    %v1336 = vadd.f32 0.0, %v1335
    %v1337 = vpop.f32.mrf.mxu0
    %v1338 = vpop.f32.mrf.mxu0
    %v1339 = vadd.f32 0.0, %v1338
    %v1340 = vpop.f32.mrf.mxu0
    %1341 = vdwg.mxu0
    %v1342 = vmul.f32 %v1280, %v1076
    %v1343 = vmul.f32 %v1283, %v1081
    %v1344 = vmul.f32 %v1288, %v1086
    %v1345 = vmul.f32 %v1291, %v1091
    %v1346 = vmul.f32 %v1296, %v1096
    %v1347 = vmul.f32 %v1299, %v1101
    %v1348 = vmul.f32 %v1304, %v1106
    %v1349 = vmul.f32 %v1307, %v1111
    %v1350 = vmul.f32 %v1312, %v1116
    %v1351 = vmul.f32 %v1315, %v1121
    %v1352 = vmul.f32 %v1320, %v1126
    %v1353 = vmul.f32 %v1323, %v1131
    %v1354 = vmul.f32 %v1328, %v1136
    %v1355 = vmul.f32 %v1331, %v1141
    %v1356 = vmul.f32 %v1336, %v1146
    %v1357 = vmul.f32 %v1339, %v1151
    %v1358 = vpack.c.bf16 %v1343, %v1342
    %v1359 = vpack.c.bf16 %v1345, %v1344
    %v1360 = vpack.c.bf16 %v1347, %v1346
    %v1361 = vpack.c.bf16 %v1349, %v1348
    %v1362 = vpack.c.bf16 %v1351, %v1350
    %v1363 = vpack.c.bf16 %v1353, %v1352
    %v1364 = vpack.c.bf16 %v1355, %v1354
    %v1365 = vpack.c.bf16 %v1357, %v1356
    %1366 = vmatprep.subr.bf16.mxu0 0
    %1367 = vmatpush1.bf16.msra.mxu0 %v1365
    %1368 = vmatprep.subr.bf16.mxu0 0
    %1369 = vmatpush1.bf16.msra.mxu0 %v1364
    %1370 = vmatprep.subr.bf16.mxu0 0
    %1371 = vmatpush1.bf16.msra.mxu0 %v1363
    %1372 = vmatprep.subr.bf16.mxu0 0
    %1373 = vmatpush1.bf16.msra.mxu0 %v1362
    %1374 = vmatprep.subr.bf16.mxu0 0
    %1375 = vmatpush1.bf16.msra.mxu0 %v1361
    %1376 = vmatprep.subr.bf16.mxu0 0
    %1377 = vmatpush1.bf16.msra.mxu0 %v1360
    %1378 = vmatprep.subr.bf16.mxu0 0
    %1379 = vmatpush1.bf16.msra.mxu0 %v1359
    %1380 = vmatprep.subr.bf16.mxu0 0
    %1381 = vmatpush1.bf16.msra.mxu0 %v1358
    %1382 = vmatprep.subr.bf16.mxu0 0
    %1383 = vmatpush2.bf16.msra.mxu0 0
    %1384 = vmatprep.subr.bf16.mxu0 0
    %1385 = vmatpush2.bf16.msra.mxu0 0
    %1386 = vmatprep.subr.bf16.mxu0 0
    %1387 = vmatpush2.bf16.msra.mxu0 0
    %1388 = vmatprep.subr.bf16.mxu0 0
    %1389 = vmatpush2.bf16.msra.mxu0 0
    %1390 = vmatprep.subr.bf16.mxu0 0
    %1391 = vmatpush2.bf16.msra.mxu0 0
    %1392 = vmatprep.subr.bf16.mxu0 0
    %1393 = vmatpush2.bf16.msra.mxu0 0
    %1394 = vmatprep.subr.bf16.mxu0 0
    %1395 = vmatpush2.bf16.msra.mxu0 0
    %1396 = vmatprep.subr.bf16.mxu0 0
    %1397 = vmatpush2.bf16.msra.mxu0 0
    %1398 = vmatprep.mubr.bf16.mxu0 0
    %1399 = vmatmul.mubr.bf16.gmra.mxu0 %v1201
    %v1400 = vpop.f32.mrf.mxu0
    %v1401 = vadd.f32 0.0, %v1400
    %v1402 = vpop.f32.mrf.mxu0
    %v1403 = vpop.f32.mrf.mxu0
    %v1404 = vpop.f32.mrf.mxu0
    %1405 = vdwg.mxu0
    %1406 = vmatprep.subr.bf16.mxu0 0
    %1407 = vmatpush1.bf16.msra.mxu0 %v1176
    %1408 = vmatprep.subr.bf16.mxu0 0
    %1409 = vmatpush1.bf16.msra.mxu0 %v1175
    %1410 = vmatprep.subr.bf16.mxu0 0
    %1411 = vmatpush1.bf16.msra.mxu0 %v1174
    %1412 = vmatprep.subr.bf16.mxu0 0
    %1413 = vmatpush1.bf16.msra.mxu0 %v1173
    %1414 = vmatprep.subr.bf16.mxu0 0
    %1415 = vmatpush1.bf16.msra.mxu0 %v1172
    %1416 = vmatprep.subr.bf16.mxu0 0
    %1417 = vmatpush1.bf16.msra.mxu0 %v1171
    %1418 = vmatprep.subr.bf16.mxu0 0
    %1419 = vmatpush1.bf16.msra.mxu0 %v1170
    %1420 = vmatprep.subr.bf16.mxu0 0
    %1421 = vmatpush1.bf16.msra.mxu0 %v1169
    %1422 = vmatprep.subr.bf16.mxu0 0
    %1423 = vmatpush2.bf16.msra.mxu0 0
    %1424 = vmatprep.subr.bf16.mxu0 0
    %1425 = vmatpush2.bf16.msra.mxu0 0
    %1426 = vmatprep.subr.bf16.mxu0 0
    %1427 = vmatpush2.bf16.msra.mxu0 0
    %1428 = vmatprep.subr.bf16.mxu0 0
    %1429 = vmatpush2.bf16.msra.mxu0 0
    %1430 = vmatprep.subr.bf16.mxu0 0
    %1431 = vmatpush2.bf16.msra.mxu0 0
    %1432 = vmatprep.subr.bf16.mxu0 0
    %1433 = vmatpush2.bf16.msra.mxu0 0
    %1434 = vmatprep.subr.bf16.mxu0 0
    %1435 = vmatpush2.bf16.msra.mxu0 0
    %1436 = vmatprep.subr.bf16.mxu0 0
    %1437 = vmatpush2.bf16.msra.mxu0 0
    %1438 = vmatprep.mubr.bf16.mxu0 0
    %1439 = vmatmul.mubr.bf16.gmra.mxu0 %v932
    %v1440 = vpop.f32.mrf.mxu0
    %v1441 = vadd.f32 %v1401, %v1440
    %v1442 = vpop.f32.mrf.mxu0
    %v1443 = vpop.f32.mrf.mxu0
    %v1444 = vpop.f32.mrf.mxu0
    %1445 = vdwg.mxu0
    %1446 = vset.pattern.permute.xlu0 2
    %1447 = vperm.xlu0 %1446, %v714
    %v1448 = vpop.permute.xlu0 %1447
    %v1450 = vlaneseq
    %v1451 = vshrl.u32 %v1450, 7
    %v1452 = vsub.s32 2, %v1451
    %v1453 = vrot.slane %v901, %v1452
    %v1454 = vadd.f32 %v1448, %v1453
    %vm1455 = vcmp.ge.f32.partialorder %v1454, 0.0
    %v1456 = vmul.f32 %v1454, 0.2
    %v1457 = vsel %vm1455, %v1454, %v1456
    %v1458 = vadd.f32 %v1457, %v138
    %1459 = vmax.xlane.f32.xlu0 %v1458
    %v1460 = vpop.xlane.xlu0 %1459
    %v1461 = vsub.f32 %v1458, %v1460
    %v1462 = vmul.f32 %v1461, 1.442695
    %v1463 = vpow.pop %v1462
    %v1464 = vmul.f32 %v1463, %v136
    %1465 = vadd.xlane.f32.xlu0 %v1464
    %v1466 = vpop.xlane.xlu0 %1465
    %v1467 = vmax.f32 %v1466, 1e-30
    %v1468 = vrcp.pop %v1467
    %v1469 = vmul.f32 %v1464, %v1468
    %v1470 = vpack.c.bf16 %v1469, %v1469
    %1471 = vxpose.xlu0.c.b16.start [1/8] %v1470, 128
    %1472 = vxpose.xlu0.c.b16.cont [2/8] 0, 128
    %1473 = vxpose.xlu0.c.b16.cont [3/8] 0, 128
    %1474 = vxpose.xlu0.c.b16.cont [4/8] 0, 128
    %1475 = vxpose.xlu0.c.b16.cont [5/8] 0, 128
    %1476 = vxpose.xlu0.c.b16.cont [6/8] 0, 128
    %1477 = vxpose.xlu0.c.b16.cont [7/8] 0, 128
    %1478 = vxpose.xlu0.c.b16.end [8/8] 0, 128
    %v1479 = vpop.trf.xlu0
    %v1480 = vpop.trf.xlu0
    %v1481 = vpop.trf.xlu0
    %v1482 = vpop.trf.xlu0
    %v1483 = vpop.trf.xlu0
    %v1484 = vpop.trf.xlu0
    %v1485 = vpop.trf.xlu0
    %v1486 = vpop.trf.xlu0
    %v1488 = vsel %vm858, %v1479, 0
    %v1491 = vsel %vm858, %v1480, 0
    %v1494 = vsel %vm858, %v1481, 0
    %v1497 = vsel %vm858, %v1482, 0
    %v1500 = vsel %vm858, %v1483, 0
    %v1503 = vsel %vm858, %v1484, 0
    %v1506 = vsel %vm858, %v1485, 0
    %v1509 = vsel %vm858, %v1486, 0
    %v1512 = vsel %vm862, %v575, 0
    %1514 = vmatprep.subr.bf16.mxu0 0
    %1515 = vmatpush1.bf16.msra.mxu0 0
    %1516 = vmatprep.subr.bf16.mxu0 0
    %1517 = vmatpush1.bf16.msra.mxu0 0
    %1518 = vmatprep.subr.bf16.mxu0 0
    %1519 = vmatpush1.bf16.msra.mxu0 0
    %1520 = vmatprep.subr.bf16.mxu0 0
    %1521 = vmatpush1.bf16.msra.mxu0 0
    %1522 = vmatprep.subr.bf16.mxu0 0
    %1523 = vmatpush1.bf16.msra.mxu0 0
    %1524 = vmatprep.subr.bf16.mxu0 0
    %1525 = vmatpush1.bf16.msra.mxu0 0
    %1526 = vmatprep.subr.bf16.mxu0 0
    %1527 = vmatpush1.bf16.msra.mxu0 0
    %1528 = vmatprep.subr.bf16.mxu0 0
    %1529 = vmatpush1.bf16.msra.mxu0 %v1512
    %1530 = vmatprep.subr.bf16.mxu0 0
    %1531 = vmatpush2.bf16.msra.mxu0 0
    %1532 = vmatprep.subr.bf16.mxu0 0
    %1533 = vmatpush2.bf16.msra.mxu0 0
    %1534 = vmatprep.subr.bf16.mxu0 0
    %1535 = vmatpush2.bf16.msra.mxu0 0
    %1536 = vmatprep.subr.bf16.mxu0 0
    %1537 = vmatpush2.bf16.msra.mxu0 0
    %1538 = vmatprep.subr.bf16.mxu0 0
    %1539 = vmatpush2.bf16.msra.mxu0 0
    %1540 = vmatprep.subr.bf16.mxu0 0
    %1541 = vmatpush2.bf16.msra.mxu0 0
    %1542 = vmatprep.subr.bf16.mxu0 0
    %1543 = vmatpush2.bf16.msra.mxu0 0
    %1544 = vmatprep.subr.bf16.mxu0 0
    %1545 = vmatpush2.bf16.msra.mxu0 0
    %1546 = vmatprep.mubr.bf16.mxu0 0
    %1547 = vmatmul.mubr.bf16.gmra.mxu0 %v1488
    %v1548 = vpop.f32.mrf.mxu0
    %v1549 = vadd.f32 0.0, %v1548
    %v1550 = vpop.f32.mrf.mxu0
    %v1551 = vpop.f32.mrf.mxu0
    %v1552 = vadd.f32 0.0, %v1551
    %v1553 = vpop.f32.mrf.mxu0
    %1554 = vmatprep.mubr.bf16.mxu0 0
    %1555 = vmatmul.mubr.bf16.gmra.mxu0 %v1491
    %v1556 = vpop.f32.mrf.mxu0
    %v1557 = vadd.f32 0.0, %v1556
    %v1558 = vpop.f32.mrf.mxu0
    %v1559 = vpop.f32.mrf.mxu0
    %v1560 = vadd.f32 0.0, %v1559
    %v1561 = vpop.f32.mrf.mxu0
    %1562 = vmatprep.mubr.bf16.mxu0 0
    %1563 = vmatmul.mubr.bf16.gmra.mxu0 %v1494
    %v1564 = vpop.f32.mrf.mxu0
    %v1565 = vadd.f32 0.0, %v1564
    %v1566 = vpop.f32.mrf.mxu0
    %v1567 = vpop.f32.mrf.mxu0
    %v1568 = vadd.f32 0.0, %v1567
    %v1569 = vpop.f32.mrf.mxu0
    %1570 = vmatprep.mubr.bf16.mxu0 0
    %1571 = vmatmul.mubr.bf16.gmra.mxu0 %v1497
    %v1572 = vpop.f32.mrf.mxu0
    %v1573 = vadd.f32 0.0, %v1572
    %v1574 = vpop.f32.mrf.mxu0
    %v1575 = vpop.f32.mrf.mxu0
    %v1576 = vadd.f32 0.0, %v1575
    %v1577 = vpop.f32.mrf.mxu0
    %1578 = vmatprep.mubr.bf16.mxu0 0
    %1579 = vmatmul.mubr.bf16.gmra.mxu0 %v1500
    %v1580 = vpop.f32.mrf.mxu0
    %v1581 = vadd.f32 0.0, %v1580
    %v1582 = vpop.f32.mrf.mxu0
    %v1583 = vpop.f32.mrf.mxu0
    %v1584 = vadd.f32 0.0, %v1583
    %v1585 = vpop.f32.mrf.mxu0
    %1586 = vmatprep.mubr.bf16.mxu0 0
    %1587 = vmatmul.mubr.bf16.gmra.mxu0 %v1503
    %v1588 = vpop.f32.mrf.mxu0
    %v1589 = vadd.f32 0.0, %v1588
    %v1590 = vpop.f32.mrf.mxu0
    %v1591 = vpop.f32.mrf.mxu0
    %v1592 = vadd.f32 0.0, %v1591
    %v1593 = vpop.f32.mrf.mxu0
    %1594 = vmatprep.mubr.bf16.mxu0 0
    %1595 = vmatmul.mubr.bf16.gmra.mxu0 %v1506
    %v1596 = vpop.f32.mrf.mxu0
    %v1597 = vadd.f32 0.0, %v1596
    %v1598 = vpop.f32.mrf.mxu0
    %v1599 = vpop.f32.mrf.mxu0
    %v1600 = vadd.f32 0.0, %v1599
    %v1601 = vpop.f32.mrf.mxu0
    %1602 = vmatprep.mubr.bf16.mxu0 0
    %1603 = vmatmul.mubr.bf16.gmra.mxu0 %v1509
    %v1604 = vpop.f32.mrf.mxu0
    %v1605 = vadd.f32 0.0, %v1604
    %v1606 = vpop.f32.mrf.mxu0
    %v1607 = vpop.f32.mrf.mxu0
    %v1608 = vadd.f32 0.0, %v1607
    %v1609 = vpop.f32.mrf.mxu0
    %1610 = vdwg.mxu0
    %v1611 = vmul.f32 %v1549, %v1076
    %v1612 = vmul.f32 %v1552, %v1081
    %v1613 = vmul.f32 %v1557, %v1086
    %v1614 = vmul.f32 %v1560, %v1091
    %v1615 = vmul.f32 %v1565, %v1096
    %v1616 = vmul.f32 %v1568, %v1101
    %v1617 = vmul.f32 %v1573, %v1106
    %v1618 = vmul.f32 %v1576, %v1111
    %v1619 = vmul.f32 %v1581, %v1116
    %v1620 = vmul.f32 %v1584, %v1121
    %v1621 = vmul.f32 %v1589, %v1126
    %v1622 = vmul.f32 %v1592, %v1131
    %v1623 = vmul.f32 %v1597, %v1136
    %v1624 = vmul.f32 %v1600, %v1141
    %v1625 = vmul.f32 %v1605, %v1146
    %v1626 = vmul.f32 %v1608, %v1151
    %v1627 = vpack.c.bf16 %v1612, %v1611
    %v1628 = vpack.c.bf16 %v1614, %v1613
    %v1629 = vpack.c.bf16 %v1616, %v1615
    %v1630 = vpack.c.bf16 %v1618, %v1617
    %v1631 = vpack.c.bf16 %v1620, %v1619
    %v1632 = vpack.c.bf16 %v1622, %v1621
    %v1633 = vpack.c.bf16 %v1624, %v1623
    %v1634 = vpack.c.bf16 %v1626, %v1625
    %1635 = vmatprep.subr.bf16.mxu0 0
    %1636 = vmatpush1.bf16.msra.mxu0 %v1634
    %1637 = vmatprep.subr.bf16.mxu0 0
    %1638 = vmatpush1.bf16.msra.mxu0 %v1633
    %1639 = vmatprep.subr.bf16.mxu0 0
    %1640 = vmatpush1.bf16.msra.mxu0 %v1632
    %1641 = vmatprep.subr.bf16.mxu0 0
    %1642 = vmatpush1.bf16.msra.mxu0 %v1631
    %1643 = vmatprep.subr.bf16.mxu0 0
    %1644 = vmatpush1.bf16.msra.mxu0 %v1630
    %1645 = vmatprep.subr.bf16.mxu0 0
    %1646 = vmatpush1.bf16.msra.mxu0 %v1629
    %1647 = vmatprep.subr.bf16.mxu0 0
    %1648 = vmatpush1.bf16.msra.mxu0 %v1628
    %1649 = vmatprep.subr.bf16.mxu0 0
    %1650 = vmatpush1.bf16.msra.mxu0 %v1627
    %1651 = vmatprep.subr.bf16.mxu0 0
    %1652 = vmatpush2.bf16.msra.mxu0 0
    %1653 = vmatprep.subr.bf16.mxu0 0
    %1654 = vmatpush2.bf16.msra.mxu0 0
    %1655 = vmatprep.subr.bf16.mxu0 0
    %1656 = vmatpush2.bf16.msra.mxu0 0
    %1657 = vmatprep.subr.bf16.mxu0 0
    %1658 = vmatpush2.bf16.msra.mxu0 0
    %1659 = vmatprep.subr.bf16.mxu0 0
    %1660 = vmatpush2.bf16.msra.mxu0 0
    %1661 = vmatprep.subr.bf16.mxu0 0
    %1662 = vmatpush2.bf16.msra.mxu0 0
    %1663 = vmatprep.subr.bf16.mxu0 0
    %1664 = vmatpush2.bf16.msra.mxu0 0
    %1665 = vmatprep.subr.bf16.mxu0 0
    %1666 = vmatpush2.bf16.msra.mxu0 0
    %1667 = vmatprep.mubr.bf16.mxu0 0
    %1668 = vmatmul.mubr.bf16.gmra.mxu0 %v1470
    %v1669 = vpop.f32.mrf.mxu0
    %v1670 = vadd.f32 0.0, %v1669
    %v1671 = vpop.f32.mrf.mxu0
    %v1672 = vpop.f32.mrf.mxu0
    %v1673 = vpop.f32.mrf.mxu0
    %1674 = vdwg.mxu0
    %v1675 = vadd.f32 %v1441, %v1670
    %1676 = vset.pattern.permute.xlu0 3
    %1677 = vperm.xlu0 %1676, %v714
    %v1678 = vpop.permute.xlu0 %1677
    %v1680 = vlaneseq
    %v1681 = vshrl.u32 %v1680, 7
    %v1682 = vsub.s32 3, %v1681
    %v1683 = vrot.slane %v901, %v1682
    %v1684 = vadd.f32 %v1678, %v1683
    %vm1685 = vcmp.ge.f32.partialorder %v1684, 0.0
    %v1686 = vmul.f32 %v1684, 0.2
    %v1687 = vsel %vm1685, %v1684, %v1686
    %v1688 = vadd.f32 %v1687, %v138
    %1689 = vmax.xlane.f32.xlu0 %v1688
    %v1690 = vpop.xlane.xlu0 %1689
    %v1691 = vsub.f32 %v1688, %v1690
    %v1692 = vmul.f32 %v1691, 1.442695
    %v1693 = vpow.pop %v1692
    %v1694 = vmul.f32 %v1693, %v136
    %1695 = vadd.xlane.f32.xlu0 %v1694
    %v1696 = vpop.xlane.xlu0 %1695
    %v1697 = vmax.f32 %v1696, 1e-30
    %v1698 = vrcp.pop %v1697
    %v1699 = vmul.f32 %v1694, %v1698
    %v1700 = vpack.c.bf16 %v1699, %v1699
    %1701 = vxpose.xlu0.c.b16.start [1/8] %v1700, 128
    %1702 = vxpose.xlu0.c.b16.cont [2/8] 0, 128
    %1703 = vxpose.xlu0.c.b16.cont [3/8] 0, 128
    %1704 = vxpose.xlu0.c.b16.cont [4/8] 0, 128
    %1705 = vxpose.xlu0.c.b16.cont [5/8] 0, 128
    %1706 = vxpose.xlu0.c.b16.cont [6/8] 0, 128
    %1707 = vxpose.xlu0.c.b16.cont [7/8] 0, 128
    %1708 = vxpose.xlu0.c.b16.end [8/8] 0, 128
    %v1709 = vpop.trf.xlu0
    %v1710 = vpop.trf.xlu0
    %v1711 = vpop.trf.xlu0
    %v1712 = vpop.trf.xlu0
    %v1713 = vpop.trf.xlu0
    %v1714 = vpop.trf.xlu0
    %v1715 = vpop.trf.xlu0
    %v1716 = vpop.trf.xlu0
    %v1718 = vsel %vm858, %v1709, 0
    %v1721 = vsel %vm858, %v1710, 0
    %v1724 = vsel %vm858, %v1711, 0
    %v1727 = vsel %vm858, %v1712, 0
    %v1730 = vsel %vm858, %v1713, 0
    %v1733 = vsel %vm858, %v1714, 0
    %v1736 = vsel %vm858, %v1715, 0
    %v1739 = vsel %vm858, %v1716, 0
    %v1742 = vsel %vm862, %v576, 0
    %1744 = vmatprep.subr.bf16.mxu0 0
    %1745 = vmatpush1.bf16.msra.mxu0 0
    %1746 = vmatprep.subr.bf16.mxu0 0
    %1747 = vmatpush1.bf16.msra.mxu0 0
    %1748 = vmatprep.subr.bf16.mxu0 0
    %1749 = vmatpush1.bf16.msra.mxu0 0
    %1750 = vmatprep.subr.bf16.mxu0 0
    %1751 = vmatpush1.bf16.msra.mxu0 0
    %1752 = vmatprep.subr.bf16.mxu0 0
    %1753 = vmatpush1.bf16.msra.mxu0 0
    %1754 = vmatprep.subr.bf16.mxu0 0
    %1755 = vmatpush1.bf16.msra.mxu0 0
    %1756 = vmatprep.subr.bf16.mxu0 0
    %1757 = vmatpush1.bf16.msra.mxu0 0
    %1758 = vmatprep.subr.bf16.mxu0 0
    %1759 = vmatpush1.bf16.msra.mxu0 %v1742
    %1760 = vmatprep.subr.bf16.mxu0 0
    %1761 = vmatpush2.bf16.msra.mxu0 0
    %1762 = vmatprep.subr.bf16.mxu0 0
    %1763 = vmatpush2.bf16.msra.mxu0 0
    %1764 = vmatprep.subr.bf16.mxu0 0
    %1765 = vmatpush2.bf16.msra.mxu0 0
    %1766 = vmatprep.subr.bf16.mxu0 0
    %1767 = vmatpush2.bf16.msra.mxu0 0
    %1768 = vmatprep.subr.bf16.mxu0 0
    %1769 = vmatpush2.bf16.msra.mxu0 0
    %1770 = vmatprep.subr.bf16.mxu0 0
    %1771 = vmatpush2.bf16.msra.mxu0 0
    %1772 = vmatprep.subr.bf16.mxu0 0
    %1773 = vmatpush2.bf16.msra.mxu0 0
    %1774 = vmatprep.subr.bf16.mxu0 0
    %1775 = vmatpush2.bf16.msra.mxu0 0
    %1776 = vmatprep.mubr.bf16.mxu0 0
    %1777 = vmatmul.mubr.bf16.gmra.mxu0 %v1718
    %v1778 = vpop.f32.mrf.mxu0
    %v1779 = vadd.f32 0.0, %v1778
    %v1780 = vpop.f32.mrf.mxu0
    %v1781 = vpop.f32.mrf.mxu0
    %v1782 = vadd.f32 0.0, %v1781
    %v1783 = vpop.f32.mrf.mxu0
    %1784 = vmatprep.mubr.bf16.mxu0 0
    %1785 = vmatmul.mubr.bf16.gmra.mxu0 %v1721
    %v1786 = vpop.f32.mrf.mxu0
    %v1787 = vadd.f32 0.0, %v1786
    %v1788 = vpop.f32.mrf.mxu0
    %v1789 = vpop.f32.mrf.mxu0
    %v1790 = vadd.f32 0.0, %v1789
    %v1791 = vpop.f32.mrf.mxu0
    %1792 = vmatprep.mubr.bf16.mxu0 0
    %1793 = vmatmul.mubr.bf16.gmra.mxu0 %v1724
    %v1794 = vpop.f32.mrf.mxu0
    %v1795 = vadd.f32 0.0, %v1794
    %v1796 = vpop.f32.mrf.mxu0
    %v1797 = vpop.f32.mrf.mxu0
    %v1798 = vadd.f32 0.0, %v1797
    %v1799 = vpop.f32.mrf.mxu0
    %1800 = vmatprep.mubr.bf16.mxu0 0
    %1801 = vmatmul.mubr.bf16.gmra.mxu0 %v1727
    %v1802 = vpop.f32.mrf.mxu0
    %v1803 = vadd.f32 0.0, %v1802
    %v1804 = vpop.f32.mrf.mxu0
    %v1805 = vpop.f32.mrf.mxu0
    %v1806 = vadd.f32 0.0, %v1805
    %v1807 = vpop.f32.mrf.mxu0
    %1808 = vmatprep.mubr.bf16.mxu0 0
    %1809 = vmatmul.mubr.bf16.gmra.mxu0 %v1730
    %v1810 = vpop.f32.mrf.mxu0
    %v1811 = vadd.f32 0.0, %v1810
    %v1812 = vpop.f32.mrf.mxu0
    %v1813 = vpop.f32.mrf.mxu0
    %v1814 = vadd.f32 0.0, %v1813
    %v1815 = vpop.f32.mrf.mxu0
    %1816 = vmatprep.mubr.bf16.mxu0 0
    %1817 = vmatmul.mubr.bf16.gmra.mxu0 %v1733
    %v1818 = vpop.f32.mrf.mxu0
    %v1819 = vadd.f32 0.0, %v1818
    %v1820 = vpop.f32.mrf.mxu0
    %v1821 = vpop.f32.mrf.mxu0
    %v1822 = vadd.f32 0.0, %v1821
    %v1823 = vpop.f32.mrf.mxu0
    %1824 = vmatprep.mubr.bf16.mxu0 0
    %1825 = vmatmul.mubr.bf16.gmra.mxu0 %v1736
    %v1826 = vpop.f32.mrf.mxu0
    %v1827 = vadd.f32 0.0, %v1826
    %v1828 = vpop.f32.mrf.mxu0
    %v1829 = vpop.f32.mrf.mxu0
    %v1830 = vadd.f32 0.0, %v1829
    %v1831 = vpop.f32.mrf.mxu0
    %1832 = vmatprep.mubr.bf16.mxu0 0
    %1833 = vmatmul.mubr.bf16.gmra.mxu0 %v1739
    %v1834 = vpop.f32.mrf.mxu0
    %v1835 = vadd.f32 0.0, %v1834
    %v1836 = vpop.f32.mrf.mxu0
    %v1837 = vpop.f32.mrf.mxu0
    %v1838 = vadd.f32 0.0, %v1837
    %v1839 = vpop.f32.mrf.mxu0
    %1840 = vdwg.mxu0
    %v1841 = vmul.f32 %v1779, %v1076
    %v1842 = vmul.f32 %v1782, %v1081
    %v1843 = vmul.f32 %v1787, %v1086
    %v1844 = vmul.f32 %v1790, %v1091
    %v1845 = vmul.f32 %v1795, %v1096
    %v1846 = vmul.f32 %v1798, %v1101
    %v1847 = vmul.f32 %v1803, %v1106
    %v1848 = vmul.f32 %v1806, %v1111
    %v1849 = vmul.f32 %v1811, %v1116
    %v1850 = vmul.f32 %v1814, %v1121
    %v1851 = vmul.f32 %v1819, %v1126
    %v1852 = vmul.f32 %v1822, %v1131
    %v1853 = vmul.f32 %v1827, %v1136
    %v1854 = vmul.f32 %v1830, %v1141
    %v1855 = vmul.f32 %v1835, %v1146
    %v1856 = vmul.f32 %v1838, %v1151
    %v1857 = vpack.c.bf16 %v1842, %v1841
    %v1858 = vpack.c.bf16 %v1844, %v1843
    %v1859 = vpack.c.bf16 %v1846, %v1845
    %v1860 = vpack.c.bf16 %v1848, %v1847
    %v1861 = vpack.c.bf16 %v1850, %v1849
    %v1862 = vpack.c.bf16 %v1852, %v1851
    %v1863 = vpack.c.bf16 %v1854, %v1853
    %v1864 = vpack.c.bf16 %v1856, %v1855
    %1865 = vmatprep.subr.bf16.mxu0 0
    %1866 = vmatpush1.bf16.msra.mxu0 %v1864
    %1867 = vmatprep.subr.bf16.mxu0 0
    %1868 = vmatpush1.bf16.msra.mxu0 %v1863
    %1869 = vmatprep.subr.bf16.mxu0 0
    %1870 = vmatpush1.bf16.msra.mxu0 %v1862
    %1871 = vmatprep.subr.bf16.mxu0 0
    %1872 = vmatpush1.bf16.msra.mxu0 %v1861
    %1873 = vmatprep.subr.bf16.mxu0 0
    %1874 = vmatpush1.bf16.msra.mxu0 %v1860
    %1875 = vmatprep.subr.bf16.mxu0 0
    %1876 = vmatpush1.bf16.msra.mxu0 %v1859
    %1877 = vmatprep.subr.bf16.mxu0 0
    %1878 = vmatpush1.bf16.msra.mxu0 %v1858
    %1879 = vmatprep.subr.bf16.mxu0 0
    %1880 = vmatpush1.bf16.msra.mxu0 %v1857
    %1881 = vmatprep.subr.bf16.mxu0 0
    %1882 = vmatpush2.bf16.msra.mxu0 0
    %1883 = vmatprep.subr.bf16.mxu0 0
    %1884 = vmatpush2.bf16.msra.mxu0 0
    %1885 = vmatprep.subr.bf16.mxu0 0
    %1886 = vmatpush2.bf16.msra.mxu0 0
    %1887 = vmatprep.subr.bf16.mxu0 0
    %1888 = vmatpush2.bf16.msra.mxu0 0
    %1889 = vmatprep.subr.bf16.mxu0 0
    %1890 = vmatpush2.bf16.msra.mxu0 0
    %1891 = vmatprep.subr.bf16.mxu0 0
    %1892 = vmatpush2.bf16.msra.mxu0 0
    %1893 = vmatprep.subr.bf16.mxu0 0
    %1894 = vmatpush2.bf16.msra.mxu0 0
    %1895 = vmatprep.subr.bf16.mxu0 0
    %1896 = vmatpush2.bf16.msra.mxu0 0
    %1897 = vmatprep.mubr.bf16.mxu0 0
    %1898 = vmatmul.mubr.bf16.gmra.mxu0 %v1700
    %v1899 = vpop.f32.mrf.mxu0
    %v1900 = vadd.f32 0.0, %v1899
    %v1901 = vpop.f32.mrf.mxu0
    %v1902 = vpop.f32.mrf.mxu0
    %v1903 = vpop.f32.mrf.mxu0
    %1904 = vdwg.mxu0
    %v1905 = vadd.f32 %v1675, %v1900
    %1907 = vset.pattern.permute.xlu0 0
    %1908 = vperm.xlu0 %1907, %v906
    %v1909 = vpop.permute.xlu0 %1908
    %v1911 = vmul.f32 %v1905, %v1909
    %v1912 = vlaneseq
    %v1913 = vshrl.u32 %v1912, 7
    %v1914 = vsub.s32 0, %v1913
    %v1915 = vrot.slane %v159, %v1914
    %v1916 = vadd.f32 %v1911, %v1915
    %v1917 = vadd.f32 %v289, %v1916
    %v1918 = vlaneseq
    %v1919 = vshrl.u32 %v1918, 7
    %v1920 = vsub.s32 0, %v1919
    %v1921 = vrot.slane %v160, %v1920
    %v1922 = vmul.f32 %v1917, %v1921
    %v1923 = vlaneseq
    %v1924 = vshrl.u32 %v1923, 7
    %v1925 = vsub.s32 0, %v1924
    %v1926 = vrot.slane %v161, %v1925
    %v1927 = vadd.f32 %v1922, %v1926
    %v1928 = vld [vmem:[%s6] sm:$0xf]
    %v1929 = vld [vmem:[%s6 + $0x4] sm:$0xf]
    %v1930 = vld [vmem:[%s6 + $0x8] sm:$0xf]
    %v1931 = vld [vmem:[%s6 + $0xc] sm:$0xf]
    %v1932 = vld [vmem:[%s6 + $0x10] sm:$0xf]
    %v1933 = vld [vmem:[%s6 + $0x14] sm:$0xf]
    %v1934 = vld [vmem:[%s6 + $0x18] sm:$0xf]
    %v1935 = vld [vmem:[%s6 + $0x1c] sm:$0xf]
    %v1936 = vld [vmem:[%s6 + $0x20] sm:$0xf]
    %v1937 = vld [vmem:[%s6 + $0x24] sm:$0xf]
    %v1938 = vld [vmem:[%s6 + $0x28] sm:$0xf]
    %v1939 = vld [vmem:[%s6 + $0x2c] sm:$0xf]
    %v1940 = vld [vmem:[%s6 + $0x30] sm:$0xf]
    %v1941 = vld [vmem:[%s6 + $0x34] sm:$0xf]
    %v1942 = vld [vmem:[%s6 + $0x38] sm:$0xf]
    %v1943 = vld [vmem:[%s6 + $0x3c] sm:$0xf]
    %v1944 = vld [vmem:[%s10] sm:$0xff]
    %v1945 = vld [vmem:[#allocation13] sm:$0xff]
    %v1946 = vpack.c.bf16 %v1927, %v1927
    %v1963 = vunpack.c.l.b16 %v1928
    %v1964 = vunpack.c.l.b16 %v1929
    %v1965 = vunpack.c.l.b16 %v1930
    %v1966 = vunpack.c.l.b16 %v1931
    %v1967 = vunpack.c.l.b16 %v1932
    %v1968 = vunpack.c.l.b16 %v1933
    %v1969 = vunpack.c.l.b16 %v1934
    %v1970 = vunpack.c.l.b16 %v1935
    %v1971 = vunpack.c.l.b16 %v1936
    %v1972 = vunpack.c.l.b16 %v1937
    %v1973 = vunpack.c.l.b16 %v1938
    %v1974 = vunpack.c.l.b16 %v1939
    %v1975 = vunpack.c.l.b16 %v1940
    %v1976 = vunpack.c.l.b16 %v1941
    %v1977 = vunpack.c.l.b16 %v1942
    %v1978 = vunpack.c.l.b16 %v1943
    %v1979 = vpack.c.b16 %v1964, %v1963
    %v1980 = vpack.c.b16 %v1966, %v1965
    %v1981 = vpack.c.b16 %v1968, %v1967
    %v1982 = vpack.c.b16 %v1970, %v1969
    %v1983 = vpack.c.b16 %v1972, %v1971
    %v1984 = vpack.c.b16 %v1974, %v1973
    %v1985 = vpack.c.b16 %v1976, %v1975
    %v1986 = vpack.c.b16 %v1978, %v1977
    %1995 = vmatprep.subr.bf16.mxu0 0
    %1996 = vmatpush1.bf16.msra.mxu0 %v1986
    %1997 = vmatprep.subr.bf16.mxu0 0
    %1998 = vmatpush1.bf16.msra.mxu0 %v1985
    %1999 = vmatprep.subr.bf16.mxu0 0
    %2000 = vmatpush1.bf16.msra.mxu0 %v1984
    %2001 = vmatprep.subr.bf16.mxu0 0
    %2002 = vmatpush1.bf16.msra.mxu0 %v1983
    %2003 = vmatprep.subr.bf16.mxu0 0
    %2004 = vmatpush1.bf16.msra.mxu0 %v1982
    %2005 = vmatprep.subr.bf16.mxu0 0
    %2006 = vmatpush1.bf16.msra.mxu0 %v1981
    %2007 = vmatprep.subr.bf16.mxu0 0
    %2008 = vmatpush1.bf16.msra.mxu0 %v1980
    %2009 = vmatprep.subr.bf16.mxu0 0
    %2010 = vmatpush1.bf16.msra.mxu0 %v1979
    %2011 = vmatprep.subr.bf16.mxu0 0
    %2012 = vmatpush2.bf16.msra.mxu0 0
    %2013 = vmatprep.subr.bf16.mxu0 0
    %2014 = vmatpush2.bf16.msra.mxu0 0
    %2015 = vmatprep.subr.bf16.mxu0 0
    %2016 = vmatpush2.bf16.msra.mxu0 0
    %2017 = vmatprep.subr.bf16.mxu0 0
    %2018 = vmatpush2.bf16.msra.mxu0 0
    %2019 = vmatprep.subr.bf16.mxu0 0
    %2020 = vmatpush2.bf16.msra.mxu0 0
    %2021 = vmatprep.subr.bf16.mxu0 0
    %2022 = vmatpush2.bf16.msra.mxu0 0
    %2023 = vmatprep.subr.bf16.mxu0 0
    %2024 = vmatpush2.bf16.msra.mxu0 0
    %2025 = vmatprep.subr.bf16.mxu0 0
    %2026 = vmatpush2.bf16.msra.mxu0 0
    %2027 = vmatprep.mubr.bf16.mxu0 0
    %2028 = vmatmul.mubr.bf16.gmra.mxu0 %v1946
    %v2029 = vpop.f32.mrf.mxu0
    %v2030 = vadd.f32 0.0, %v2029
    %v2031 = vpop.f32.mrf.mxu0
    %v2032 = vpop.f32.mrf.mxu0
    %v2033 = vpop.f32.mrf.mxu0
    %2034 = vdwg.mxu0
    %v2035 = vpack.c.bf16 %v2030, %v2030
    %2036 = vmatprep.subr.mxu0 0.0
    %2037 = vmatpush1.xpose.msra.mxu0 0.0
    %2038 = vmatprep.subr.mxu0 0.0
    %2039 = vmatpush1.xpose.msra.mxu0 0.0
    %2040 = vmatprep.subr.mxu0 0.0
    %2041 = vmatpush1.xpose.msra.mxu0 0.0
    %2042 = vmatprep.subr.mxu0 0.0
    %2043 = vmatpush1.xpose.msra.mxu0 0.0
    %2044 = vmatprep.subr.mxu0 0.0
    %2045 = vmatpush1.xpose.msra.mxu0 0.0
    %2046 = vmatprep.subr.mxu0 0.0
    %2047 = vmatpush1.xpose.msra.mxu0 0.0
    %2048 = vmatprep.subr.mxu0 0.0
    %2049 = vmatpush1.xpose.msra.mxu0 0.0
    %2050 = vmatprep.subr.mxu0 0.0
    %2051 = vmatpush1.xpose.msra.mxu0 0.0
    %2052 = vmatprep.subr.mxu0 0.0
    %2053 = vmatpush1.xpose.msra.mxu0 0.0
    %2054 = vmatprep.subr.mxu0 0.0
    %2055 = vmatpush1.xpose.msra.mxu0 0.0
    %2056 = vmatprep.subr.mxu0 0.0
    %2057 = vmatpush1.xpose.msra.mxu0 0.0
    %2058 = vmatprep.subr.mxu0 0.0
    %2059 = vmatpush1.xpose.msra.mxu0 0.0
    %2060 = vmatprep.subr.mxu0 0.0
    %2061 = vmatpush1.xpose.msra.mxu0 0.0
    %2062 = vmatprep.subr.mxu0 0.0
    %2063 = vmatpush1.xpose.msra.mxu0 0.0
    %2064 = vmatprep.subr.mxu0 0.0
    %2065 = vmatpush1.xpose.msra.mxu0 0.0
    %2066 = vmatprep.subr.mxu0 0.0
    %2067 = vmatpush1.xpose.msra.mxu0 %v1944
    %2068 = vmatprep.subr.mxu0 0.0
    %2069 = vmatpush2.xpose.msra.mxu0 0.0
    %2070 = vmatprep.subr.mxu0 0.0
    %2071 = vmatpush2.xpose.msra.mxu0 0.0
    %2072 = vmatprep.subr.mxu0 0.0
    %2073 = vmatpush2.xpose.msra.mxu0 0.0
    %2074 = vmatprep.subr.mxu0 0.0
    %2075 = vmatpush2.xpose.msra.mxu0 0.0
    %2076 = vmatprep.subr.mxu0 0.0
    %2077 = vmatpush2.xpose.msra.mxu0 0.0
    %2078 = vmatprep.subr.mxu0 0.0
    %2079 = vmatpush2.xpose.msra.mxu0 0.0
    %2080 = vmatprep.subr.mxu0 0.0
    %2081 = vmatpush2.xpose.msra.mxu0 0.0
    %2082 = vmatprep.subr.mxu0 0.0
    %2083 = vmatpush2.xpose.msra.mxu0 0.0
    %2084 = vmatprep.subr.mxu0 0.0
    %2085 = vmatpush2.xpose.msra.mxu0 0.0
    %2086 = vmatprep.subr.mxu0 0.0
    %2087 = vmatpush2.xpose.msra.mxu0 0.0
    %2088 = vmatprep.subr.mxu0 0.0
    %2089 = vmatpush2.xpose.msra.mxu0 0.0
    %2090 = vmatprep.subr.mxu0 0.0
    %2091 = vmatpush2.xpose.msra.mxu0 0.0
    %2092 = vmatprep.subr.mxu0 0.0
    %2093 = vmatpush2.xpose.msra.mxu0 0.0
    %2094 = vmatprep.subr.mxu0 0.0
    %2095 = vmatpush2.xpose.msra.mxu0 0.0
    %2096 = vmatprep.subr.mxu0 0.0
    %2097 = vmatpush2.xpose.msra.mxu0 0.0
    %2098 = vmatprep.subr.mxu0 0.0
    %2099 = vmatpush2.xpose.msra.mxu0 0.0
    %2100 = vmatprep.mubr.f32.mxu0 0.0
    %2101 = vmatmul.mubr.f32.gmra.mxu0 %v2030
    %v2102 = vpop.f32.mrf.mxu0
    %v2103 = vadd.f32 0.0, %v2102
    %v2104 = vpop.f32.mrf.mxu0
    %2105 = vdwg.mxu0
    %2106 = vmatprep.subr.mxu0 0.0
    %2107 = vmatpush1.xpose.msra.mxu0 0.0
    %2108 = vmatprep.subr.mxu0 0.0
    %2109 = vmatpush1.xpose.msra.mxu0 0.0
    %2110 = vmatprep.subr.mxu0 0.0
    %2111 = vmatpush1.xpose.msra.mxu0 0.0
    %2112 = vmatprep.subr.mxu0 0.0
    %2113 = vmatpush1.xpose.msra.mxu0 0.0
    %2114 = vmatprep.subr.mxu0 0.0
    %2115 = vmatpush1.xpose.msra.mxu0 0.0
    %2116 = vmatprep.subr.mxu0 0.0
    %2117 = vmatpush1.xpose.msra.mxu0 0.0
    %2118 = vmatprep.subr.mxu0 0.0
    %2119 = vmatpush1.xpose.msra.mxu0 0.0
    %2120 = vmatprep.subr.mxu0 0.0
    %2121 = vmatpush1.xpose.msra.mxu0 0.0
    %2122 = vmatprep.subr.mxu0 0.0
    %2123 = vmatpush1.xpose.msra.mxu0 0.0
    %2124 = vmatprep.subr.mxu0 0.0
    %2125 = vmatpush1.xpose.msra.mxu0 0.0
    %2126 = vmatprep.subr.mxu0 0.0
    %2127 = vmatpush1.xpose.msra.mxu0 0.0
    %2128 = vmatprep.subr.mxu0 0.0
    %2129 = vmatpush1.xpose.msra.mxu0 0.0
    %2130 = vmatprep.subr.mxu0 0.0
    %2131 = vmatpush1.xpose.msra.mxu0 0.0
    %2132 = vmatprep.subr.mxu0 0.0
    %2133 = vmatpush1.xpose.msra.mxu0 0.0
    %2134 = vmatprep.subr.mxu0 0.0
    %2135 = vmatpush1.xpose.msra.mxu0 0.0
    %2136 = vmatprep.subr.mxu0 0.0
    %2137 = vmatpush1.xpose.msra.mxu0 %v2030
    %2138 = vmatprep.subr.mxu0 0.0
    %2139 = vmatpush2.xpose.msra.mxu0 0.0
    %2140 = vmatprep.subr.mxu0 0.0
    %2141 = vmatpush2.xpose.msra.mxu0 0.0
    %2142 = vmatprep.subr.mxu0 0.0
    %2143 = vmatpush2.xpose.msra.mxu0 0.0
    %2144 = vmatprep.subr.mxu0 0.0
    %2145 = vmatpush2.xpose.msra.mxu0 0.0
    %2146 = vmatprep.subr.mxu0 0.0
    %2147 = vmatpush2.xpose.msra.mxu0 0.0
    %2148 = vmatprep.subr.mxu0 0.0
    %2149 = vmatpush2.xpose.msra.mxu0 0.0
    %2150 = vmatprep.subr.mxu0 0.0
    %2151 = vmatpush2.xpose.msra.mxu0 0.0
    %2152 = vmatprep.subr.mxu0 0.0
    %2153 = vmatpush2.xpose.msra.mxu0 0.0
    %2154 = vmatprep.subr.mxu0 0.0
    %2155 = vmatpush2.xpose.msra.mxu0 0.0
    %2156 = vmatprep.subr.mxu0 0.0
    %2157 = vmatpush2.xpose.msra.mxu0 0.0
    %2158 = vmatprep.subr.mxu0 0.0
    %2159 = vmatpush2.xpose.msra.mxu0 0.0
    %2160 = vmatprep.subr.mxu0 0.0
    %2161 = vmatpush2.xpose.msra.mxu0 0.0
    %2162 = vmatprep.subr.mxu0 0.0
    %2163 = vmatpush2.xpose.msra.mxu0 0.0
    %2164 = vmatprep.subr.mxu0 0.0
    %2165 = vmatpush2.xpose.msra.mxu0 0.0
    %2166 = vmatprep.subr.mxu0 0.0
    %2167 = vmatpush2.xpose.msra.mxu0 0.0
    %2168 = vmatprep.subr.mxu0 0.0
    %2169 = vmatpush2.xpose.msra.mxu0 0.0
    %2170 = vmatprep.mubr.f32.mxu0 0.0
    %2171 = vmatmul.mubr.f32.gmra.mxu0 %v1945
    %v2172 = vpop.f32.mrf.mxu0
    %v2173 = vadd.f32 0.0, %v2172
    %v2174 = vpop.f32.mrf.mxu0
    %2175 = vdwg.mxu0
    %v2176 = vpack.c.bf16 %v2173, %v2173
    %v2178 = vsel %vm858, %v2176, 0
    %2180 = vmatprep.subr.bf16.mxu0 0
    %2181 = vmatpush1.bf16.msra.mxu0 0
    %2182 = vmatprep.subr.bf16.mxu0 0
    %2183 = vmatpush1.bf16.msra.mxu0 0
    %2184 = vmatprep.subr.bf16.mxu0 0
    %2185 = vmatpush1.bf16.msra.mxu0 0
    %2186 = vmatprep.subr.bf16.mxu0 0
    %2187 = vmatpush1.bf16.msra.mxu0 0
    %2188 = vmatprep.subr.bf16.mxu0 0
    %2189 = vmatpush1.bf16.msra.mxu0 0
    %2190 = vmatprep.subr.bf16.mxu0 0
    %2191 = vmatpush1.bf16.msra.mxu0 0
    %2192 = vmatprep.subr.bf16.mxu0 0
    %2193 = vmatpush1.bf16.msra.mxu0 0
    %2194 = vmatprep.subr.bf16.mxu0 0
    %2195 = vmatpush1.bf16.msra.mxu0 %v864
    %2196 = vmatprep.subr.bf16.mxu0 0
    %2197 = vmatpush2.bf16.msra.mxu0 0
    %2198 = vmatprep.subr.bf16.mxu0 0
    %2199 = vmatpush2.bf16.msra.mxu0 0
    %2200 = vmatprep.subr.bf16.mxu0 0
    %2201 = vmatpush2.bf16.msra.mxu0 0
    %2202 = vmatprep.subr.bf16.mxu0 0
    %2203 = vmatpush2.bf16.msra.mxu0 0
    %2204 = vmatprep.subr.bf16.mxu0 0
    %2205 = vmatpush2.bf16.msra.mxu0 0
    %2206 = vmatprep.subr.bf16.mxu0 0
    %2207 = vmatpush2.bf16.msra.mxu0 0
    %2208 = vmatprep.subr.bf16.mxu0 0
    %2209 = vmatpush2.bf16.msra.mxu0 0
    %2210 = vmatprep.subr.bf16.mxu0 0
    %2211 = vmatpush2.bf16.msra.mxu0 0
    %2212 = vmatprep.mubr.bf16.mxu0 0
    %2213 = vmatmul.mubr.bf16.gmra.mxu0 %v2178
    %v2214 = vpop.f32.mrf.mxu0
    %v2215 = vadd.f32 0.0, %v2214
    %v2216 = vpop.f32.mrf.mxu0
    %v2217 = vpop.f32.mrf.mxu0
    %v2218 = vpop.f32.mrf.mxu0
    %2219 = vdwg.mxu0
    %2221 = vset.pattern.permute.xlu0 0
    %2222 = vperm.xlu0 %2221, %v2103
    %v2223 = vpop.permute.xlu0 %2222
    %v2225 = vlaneseq
    %v2226 = vshrl.u32 %v2225, 7
    %v2227 = vsub.s32 0, %v2226
    %v2228 = vrot.slane %v2215, %v2227
    %v2229 = vadd.f32 %v2223, %v2228
    %vm2230 = vcmp.ge.f32.partialorder %v2229, 0.0
    %v2231 = vmul.f32 %v2229, 0.2
    %v2232 = vsel %vm2230, %v2229, %v2231
    %v2233 = vadd.f32 %v2232, %v138
    %2234 = vmax.xlane.f32.xlu0 %v2233
    %v2235 = vpop.xlane.xlu0 %2234
    %v2236 = vsub.f32 %v2233, %v2235
    %v2237 = vmul.f32 %v2236, 1.442695
    %v2238 = vpow.pop %v2237
    %v2239 = vmul.f32 %v2238, %v136
    %2240 = vadd.xlane.f32.xlu0 %v2239
    %v2241 = vpop.xlane.xlu0 %2240
    %v2242 = vmax.f32 %v2241, 1e-30
    %v2243 = vrcp.pop %v2242
    %v2244 = vmul.f32 %v2239, %v2243
    %v2245 = vpack.c.bf16 %v2244, %v2244
    %2246 = vxpose.xlu0.c.b16.start [1/8] %v2245, 128
    %2247 = vxpose.xlu0.c.b16.cont [2/8] 0, 128
    %2248 = vxpose.xlu0.c.b16.cont [3/8] 0, 128
    %2249 = vxpose.xlu0.c.b16.cont [4/8] 0, 128
    %2250 = vxpose.xlu0.c.b16.cont [5/8] 0, 128
    %2251 = vxpose.xlu0.c.b16.cont [6/8] 0, 128
    %2252 = vxpose.xlu0.c.b16.cont [7/8] 0, 128
    %2253 = vxpose.xlu0.c.b16.end [8/8] 0, 128
    %v2254 = vpop.trf.xlu0
    %v2255 = vpop.trf.xlu0
    %v2256 = vpop.trf.xlu0
    %v2257 = vpop.trf.xlu0
    %v2258 = vpop.trf.xlu0
    %v2259 = vpop.trf.xlu0
    %v2260 = vpop.trf.xlu0
    %v2261 = vpop.trf.xlu0
    %v2263 = vsel %vm858, %v2254, 0
    %v2266 = vsel %vm858, %v2255, 0
    %v2269 = vsel %vm858, %v2256, 0
    %v2272 = vsel %vm858, %v2257, 0
    %v2275 = vsel %vm858, %v2258, 0
    %v2278 = vsel %vm858, %v2259, 0
    %v2281 = vsel %vm858, %v2260, 0
    %v2284 = vsel %vm858, %v2261, 0
    %v2287 = vsel %vm862, %v2035, 0
    %2289 = vmatprep.subr.bf16.mxu0 0
    %2290 = vmatpush1.bf16.msra.mxu0 0
    %2291 = vmatprep.subr.bf16.mxu0 0
    %2292 = vmatpush1.bf16.msra.mxu0 0
    %2293 = vmatprep.subr.bf16.mxu0 0
    %2294 = vmatpush1.bf16.msra.mxu0 0
    %2295 = vmatprep.subr.bf16.mxu0 0
    %2296 = vmatpush1.bf16.msra.mxu0 0
    %2297 = vmatprep.subr.bf16.mxu0 0
    %2298 = vmatpush1.bf16.msra.mxu0 0
    %2299 = vmatprep.subr.bf16.mxu0 0
    %2300 = vmatpush1.bf16.msra.mxu0 0
    %2301 = vmatprep.subr.bf16.mxu0 0
    %2302 = vmatpush1.bf16.msra.mxu0 0
    %2303 = vmatprep.subr.bf16.mxu0 0
    %2304 = vmatpush1.bf16.msra.mxu0 %v2287
    %2305 = vmatprep.subr.bf16.mxu0 0
    %2306 = vmatpush2.bf16.msra.mxu0 0
    %2307 = vmatprep.subr.bf16.mxu0 0
    %2308 = vmatpush2.bf16.msra.mxu0 0
    %2309 = vmatprep.subr.bf16.mxu0 0
    %2310 = vmatpush2.bf16.msra.mxu0 0
    %2311 = vmatprep.subr.bf16.mxu0 0
    %2312 = vmatpush2.bf16.msra.mxu0 0
    %2313 = vmatprep.subr.bf16.mxu0 0
    %2314 = vmatpush2.bf16.msra.mxu0 0
    %2315 = vmatprep.subr.bf16.mxu0 0
    %2316 = vmatpush2.bf16.msra.mxu0 0
    %2317 = vmatprep.subr.bf16.mxu0 0
    %2318 = vmatpush2.bf16.msra.mxu0 0
    %2319 = vmatprep.subr.bf16.mxu0 0
    %2320 = vmatpush2.bf16.msra.mxu0 0
    %2321 = vmatprep.mubr.bf16.mxu0 0
    %2322 = vmatmul.mubr.bf16.gmra.mxu0 %v2263
    %v2323 = vpop.f32.mrf.mxu0
    %v2324 = vadd.f32 0.0, %v2323
    %v2325 = vpop.f32.mrf.mxu0
    %v2326 = vpop.f32.mrf.mxu0
    %v2327 = vadd.f32 0.0, %v2326
    %v2328 = vpop.f32.mrf.mxu0
    %2329 = vmatprep.mubr.bf16.mxu0 0
    %2330 = vmatmul.mubr.bf16.gmra.mxu0 %v2266
    %v2331 = vpop.f32.mrf.mxu0
    %v2332 = vadd.f32 0.0, %v2331
    %v2333 = vpop.f32.mrf.mxu0
    %v2334 = vpop.f32.mrf.mxu0
    %v2335 = vadd.f32 0.0, %v2334
    %v2336 = vpop.f32.mrf.mxu0
    %2337 = vmatprep.mubr.bf16.mxu0 0
    %2338 = vmatmul.mubr.bf16.gmra.mxu0 %v2269
    %v2339 = vpop.f32.mrf.mxu0
    %v2340 = vadd.f32 0.0, %v2339
    %v2341 = vpop.f32.mrf.mxu0
    %v2342 = vpop.f32.mrf.mxu0
    %v2343 = vadd.f32 0.0, %v2342
    %v2344 = vpop.f32.mrf.mxu0
    %2345 = vmatprep.mubr.bf16.mxu0 0
    %2346 = vmatmul.mubr.bf16.gmra.mxu0 %v2272
    %v2347 = vpop.f32.mrf.mxu0
    %v2348 = vadd.f32 0.0, %v2347
    %v2349 = vpop.f32.mrf.mxu0
    %v2350 = vpop.f32.mrf.mxu0
    %v2351 = vadd.f32 0.0, %v2350
    %v2352 = vpop.f32.mrf.mxu0
    %2353 = vmatprep.mubr.bf16.mxu0 0
    %2354 = vmatmul.mubr.bf16.gmra.mxu0 %v2275
    %v2355 = vpop.f32.mrf.mxu0
    %v2356 = vadd.f32 0.0, %v2355
    %v2357 = vpop.f32.mrf.mxu0
    %v2358 = vpop.f32.mrf.mxu0
    %v2359 = vadd.f32 0.0, %v2358
    %v2360 = vpop.f32.mrf.mxu0
    %2361 = vmatprep.mubr.bf16.mxu0 0
    %2362 = vmatmul.mubr.bf16.gmra.mxu0 %v2278
    %v2363 = vpop.f32.mrf.mxu0
    %v2364 = vadd.f32 0.0, %v2363
    %v2365 = vpop.f32.mrf.mxu0
    %v2366 = vpop.f32.mrf.mxu0
    %v2367 = vadd.f32 0.0, %v2366
    %v2368 = vpop.f32.mrf.mxu0
    %2369 = vmatprep.mubr.bf16.mxu0 0
    %2370 = vmatmul.mubr.bf16.gmra.mxu0 %v2281
    %v2371 = vpop.f32.mrf.mxu0
    %v2372 = vadd.f32 0.0, %v2371
    %v2373 = vpop.f32.mrf.mxu0
    %v2374 = vpop.f32.mrf.mxu0
    %v2375 = vadd.f32 0.0, %v2374
    %v2376 = vpop.f32.mrf.mxu0
    %2377 = vmatprep.mubr.bf16.mxu0 0
    %2378 = vmatmul.mubr.bf16.gmra.mxu0 %v2284
    %v2379 = vpop.f32.mrf.mxu0
    %v2380 = vadd.f32 0.0, %v2379
    %v2381 = vpop.f32.mrf.mxu0
    %v2382 = vpop.f32.mrf.mxu0
    %v2383 = vadd.f32 0.0, %v2382
    %v2384 = vpop.f32.mrf.mxu0
    %2385 = vdwg.mxu0
    %v2386 = vmul.f32 %v2324, %v1076
    %v2387 = vmul.f32 %v2327, %v1081
    %v2388 = vmul.f32 %v2332, %v1086
    %v2389 = vmul.f32 %v2335, %v1091
    %v2390 = vmul.f32 %v2340, %v1096
    %v2391 = vmul.f32 %v2343, %v1101
    %v2392 = vmul.f32 %v2348, %v1106
    %v2393 = vmul.f32 %v2351, %v1111
    %v2394 = vmul.f32 %v2356, %v1116
    %v2395 = vmul.f32 %v2359, %v1121
    %v2396 = vmul.f32 %v2364, %v1126
    %v2397 = vmul.f32 %v2367, %v1131
    %v2398 = vmul.f32 %v2372, %v1136
    %v2399 = vmul.f32 %v2375, %v1141
    %v2400 = vmul.f32 %v2380, %v1146
    %v2401 = vmul.f32 %v2383, %v1151
    %v2402 = vpack.c.bf16 %v2387, %v2386
    %v2403 = vpack.c.bf16 %v2389, %v2388
    %v2404 = vpack.c.bf16 %v2391, %v2390
    %v2405 = vpack.c.bf16 %v2393, %v2392
    %v2406 = vpack.c.bf16 %v2395, %v2394
    %v2407 = vpack.c.bf16 %v2397, %v2396
    %v2408 = vpack.c.bf16 %v2399, %v2398
    %v2409 = vpack.c.bf16 %v2401, %v2400
    %2410 = vmatprep.subr.bf16.mxu0 0
    %2411 = vmatpush1.bf16.msra.mxu0 %v2409
    %2412 = vmatprep.subr.bf16.mxu0 0
    %2413 = vmatpush1.bf16.msra.mxu0 %v2408
    %2414 = vmatprep.subr.bf16.mxu0 0
    %2415 = vmatpush1.bf16.msra.mxu0 %v2407
    %2416 = vmatprep.subr.bf16.mxu0 0
    %2417 = vmatpush1.bf16.msra.mxu0 %v2406
    %2418 = vmatprep.subr.bf16.mxu0 0
    %2419 = vmatpush1.bf16.msra.mxu0 %v2405
    %2420 = vmatprep.subr.bf16.mxu0 0
    %2421 = vmatpush1.bf16.msra.mxu0 %v2404
    %2422 = vmatprep.subr.bf16.mxu0 0
    %2423 = vmatpush1.bf16.msra.mxu0 %v2403
    %2424 = vmatprep.subr.bf16.mxu0 0
    %2425 = vmatpush1.bf16.msra.mxu0 %v2402
    %2426 = vmatprep.subr.bf16.mxu0 0
    %2427 = vmatpush2.bf16.msra.mxu0 0
    %2428 = vmatprep.subr.bf16.mxu0 0
    %2429 = vmatpush2.bf16.msra.mxu0 0
    %2430 = vmatprep.subr.bf16.mxu0 0
    %2431 = vmatpush2.bf16.msra.mxu0 0
    %2432 = vmatprep.subr.bf16.mxu0 0
    %2433 = vmatpush2.bf16.msra.mxu0 0
    %2434 = vmatprep.subr.bf16.mxu0 0
    %2435 = vmatpush2.bf16.msra.mxu0 0
    %2436 = vmatprep.subr.bf16.mxu0 0
    %2437 = vmatpush2.bf16.msra.mxu0 0
    %2438 = vmatprep.subr.bf16.mxu0 0
    %2439 = vmatpush2.bf16.msra.mxu0 0
    %2440 = vmatprep.subr.bf16.mxu0 0
    %2441 = vmatpush2.bf16.msra.mxu0 0
    %2442 = vmatprep.mubr.bf16.mxu0 0
    %2443 = vmatmul.mubr.bf16.gmra.mxu0 %v2245
    %v2444 = vpop.f32.mrf.mxu0
    %v2445 = vadd.f32 0.0, %v2444
    %v2446 = vpop.f32.mrf.mxu0
    %v2447 = vpop.f32.mrf.mxu0
    %v2448 = vpop.f32.mrf.mxu0
    %2449 = vdwg.mxu0
    %2451 = vset.pattern.permute.xlu0 0
    %2452 = vperm.xlu0 %2451, %v139
    %v2453 = vpop.permute.xlu0 %2452
    %v2455 = vmul.f32 %v2445, %v2453
    %v2456 = vlaneseq
    %v2457 = vshrl.u32 %v2456, 7
    %v2458 = vsub.s32 0, %v2457
    %v2459 = vrot.slane %v162, %v2458
    %v2460 = vadd.f32 %v2455, %v2459
    %v2461 = vadd.f32 %v1927, %v2460
    %v2462 = vlaneseq
    %v2463 = vshrl.u32 %v2462, 7
    %v2464 = vsub.s32 0, %v2463
    %v2465 = vrot.slane %v163, %v2464
    %v2466 = vmul.f32 %v2461, %v2465
    %v2467 = vlaneseq
    %v2468 = vshrl.u32 %v2467, 7
    %v2469 = vsub.s32 0, %v2468
    %v2470 = vrot.slane %v164, %v2469
    %v2471 = vadd.f32 %v2466, %v2470
    %v2472 = vpack.c.bf16 %v2471, %v2471
    %v2473 = vld [vmem:[#allocation8] sm:$0xf]
    %v2474 = vld [vmem:[#allocation8 + $0x4] sm:$0xf]
    %v2475 = vld [vmem:[#allocation8 + $0x8] sm:$0xf]
    %v2476 = vld [vmem:[#allocation8 + $0xc] sm:$0xf]
    %v2477 = vld [vmem:[#allocation8 + $0x10] sm:$0xf]
    %v2478 = vld [vmem:[#allocation8 + $0x14] sm:$0xf]
    %v2479 = vld [vmem:[#allocation8 + $0x18] sm:$0xf]
    %v2480 = vld [vmem:[#allocation8 + $0x1c] sm:$0xf]
    %v2481 = vld [vmem:[#allocation8 + $0x20] sm:$0xf]
    %v2482 = vld [vmem:[#allocation8 + $0x24] sm:$0xf]
    %v2483 = vld [vmem:[#allocation8 + $0x28] sm:$0xf]
    %v2484 = vld [vmem:[#allocation8 + $0x2c] sm:$0xf]
    %v2485 = vld [vmem:[#allocation8 + $0x30] sm:$0xf]
    %v2486 = vld [vmem:[#allocation8 + $0x34] sm:$0xf]
    %v2487 = vld [vmem:[#allocation8 + $0x38] sm:$0xf]
    %v2488 = vld [vmem:[#allocation8 + $0x3c] sm:$0xf]
    %v2489 = vlaneseq
    %v2490 = vshrl.u32 %v2489, 7
    %v2491 = vsub.s32 0, %v2490
    %v2492 = vrot.slane %v165, %v2491
    %v2509 = vunpack.c.l.b16 %v2473
    %v2510 = vunpack.c.l.b16 %v2474
    %v2511 = vunpack.c.l.b16 %v2475
    %v2512 = vunpack.c.l.b16 %v2476
    %v2513 = vunpack.c.l.b16 %v2477
    %v2514 = vunpack.c.l.b16 %v2478
    %v2515 = vunpack.c.l.b16 %v2479
    %v2516 = vunpack.c.l.b16 %v2480
    %v2517 = vunpack.c.l.b16 %v2481
    %v2518 = vunpack.c.l.b16 %v2482
    %v2519 = vunpack.c.l.b16 %v2483
    %v2520 = vunpack.c.l.b16 %v2484
    %v2521 = vunpack.c.l.b16 %v2485
    %v2522 = vunpack.c.l.b16 %v2486
    %v2523 = vunpack.c.l.b16 %v2487
    %v2524 = vunpack.c.l.b16 %v2488
    %v2525 = vpack.c.b16 %v2510, %v2509
    %v2526 = vpack.c.b16 %v2512, %v2511
    %v2527 = vpack.c.b16 %v2514, %v2513
    %v2528 = vpack.c.b16 %v2516, %v2515
    %v2529 = vpack.c.b16 %v2518, %v2517
    %v2530 = vpack.c.b16 %v2520, %v2519
    %v2531 = vpack.c.b16 %v2522, %v2521
    %v2532 = vpack.c.b16 %v2524, %v2523
    %2541 = vmatprep.subr.bf16.mxu0 0
    %2542 = vmatpush1.bf16.msra.mxu0 %v2532
    %2543 = vmatprep.subr.bf16.mxu0 0
    %2544 = vmatpush1.bf16.msra.mxu0 %v2531
    %2545 = vmatprep.subr.bf16.mxu0 0
    %2546 = vmatpush1.bf16.msra.mxu0 %v2530
    %2547 = vmatprep.subr.bf16.mxu0 0
    %2548 = vmatpush1.bf16.msra.mxu0 %v2529
    %2549 = vmatprep.subr.bf16.mxu0 0
    %2550 = vmatpush1.bf16.msra.mxu0 %v2528
    %2551 = vmatprep.subr.bf16.mxu0 0
    %2552 = vmatpush1.bf16.msra.mxu0 %v2527
    %2553 = vmatprep.subr.bf16.mxu0 0
    %2554 = vmatpush1.bf16.msra.mxu0 %v2526
    %2555 = vmatprep.subr.bf16.mxu0 0
    %2556 = vmatpush1.bf16.msra.mxu0 %v2525
    %2557 = vmatprep.subr.bf16.mxu0 0
    %2558 = vmatpush2.bf16.msra.mxu0 0
    %2559 = vmatprep.subr.bf16.mxu0 0
    %2560 = vmatpush2.bf16.msra.mxu0 0
    %2561 = vmatprep.subr.bf16.mxu0 0
    %2562 = vmatpush2.bf16.msra.mxu0 0
    %2563 = vmatprep.subr.bf16.mxu0 0
    %2564 = vmatpush2.bf16.msra.mxu0 0
    %2565 = vmatprep.subr.bf16.mxu0 0
    %2566 = vmatpush2.bf16.msra.mxu0 0
    %2567 = vmatprep.subr.bf16.mxu0 0
    %2568 = vmatpush2.bf16.msra.mxu0 0
    %2569 = vmatprep.subr.bf16.mxu0 0
    %2570 = vmatpush2.bf16.msra.mxu0 0
    %2571 = vmatprep.subr.bf16.mxu0 0
    %2572 = vmatpush2.bf16.msra.mxu0 0
    %2573 = vmatprep.mubr.bf16.mxu0 0
    %2574 = vmatmul.mubr.bf16.gmra.mxu0 %v2472
    %v2575 = vpop.f32.mrf.mxu0
    %v2576 = vadd.f32 %v2492, %v2575
    %v2577 = vpop.f32.mrf.mxu0
    %v2578 = vpop.f32.mrf.mxu0
    %v2579 = vpop.f32.mrf.mxu0
    %2580 = vdwg.mxu0
    %vm2581 = vcmp.ge.f32.partialorder %v2576, 0.0
    %v2582 = vmul.f32 %v2576, 0.2
    %v2583 = vsel %vm2581, %v2576, %v2582
    %v2584 = vadd.f32 %v134, %v2583
    %v2585 = vlaneseq
    %v2586 = vshrl.u32 %v2585, 7
    %v2587 = vsub.s32 0, %v2586
    %v2588 = vrot.slane %v166, %v2587
    %v2589 = vmul.f32 %v2584, %v2588
    %v2590 = vlaneseq
    %v2591 = vshrl.u32 %v2590, 7
    %v2592 = vsub.s32 0, %v2591
    %v2593 = vrot.slane %v167, %v2592
    %v2594 = vadd.f32 %v2589, %v2593
    %2595 = vst [vmem:[#allocation14] sm:$0xff] %v2594
    // Predicated region
    $region86: #{tpu_custom_call.1} parent=1 // pred_check
      _
    $region87: #{tpu_custom_call.1} parent=1 // pred_check_branch
      %2597 = sbr.rel (0) target = $region89
    $region88: #{tpu_custom_call.1} parent=1 // pred_region
      %s2599 = ssub.s32 128, 128
      %2600 = vsyncadd [#allocation4], %s2599
      %s2602 = sshll.u32 [#allocation14], 4
      %s2603 = int_to_ptr.vmem [resolvable:$true] %s2602
      %2605 = dma.vmem_to_hbm [thread:$0]  %s2603, 128, %s14, [#allocation4]
    $region89: #{tpu_custom_call.1} parent=1 // pred_fallthru
      _
    // Predicated region
    $region90: #{tpu_custom_call.1} parent=1 // pred_check
      _
    $region91: #{tpu_custom_call.1} parent=1 // pred_check_branch
      %2607 = sbr.rel (0) target = $region93
    $region92: #{tpu_custom_call.1} parent=1 // pred_region
      %2608 = dma.done [#allocation4], 128
    $region93: #{tpu_custom_call.1} parent=1 // pred_fallthru
      _
    %2609 = vsyncpa [#allocation3], 1
    %2610 = vsyncpa [#allocation6], 1
    %2611 = vsyncpa [#allocation9], 1
    %2612 = vsyncpa [#allocation12], 1
    %2613 = vsyncpa [#allocation4], 1

</llo_original>
